<compile_context>
chip_gen: v7x
topology: tpu7x:2x2x1
jax: 0.10.0
libtpu: 0.0.40
codegen_flags: <defaults>
</compile_context>

<pallas_src>
import functools
import math

import jax
import jax.numpy as jnp
from jax.experimental import pallas as pl
from jax.experimental.pallas import tpu as pltpu


# ----------------------------------------------------------------------------
# Pallas kernels: each conv = one MXU matmul over im2col patches with the
# bias / residual / folded-BatchNorm / LeakyReLU epilogues fused in-kernel.
# ----------------------------------------------------------------------------
def _leaky(z, slope):
    return jnp.where(z >= 0, z, slope * z)


def _conv_dual_kernel(p_ref, w_ref, b_ref, s1_ref, t1_ref, s2_ref, t2_ref,
                      o1_ref, o2_ref, *, slope, act1):
    # o1 = [leaky]((acc + b) * s1 + t1);  o2 = leaky(o1 * s2 + t2)
    z = jnp.dot(p_ref[...], w_ref[...], preferred_element_type=jnp.float32)
    z = z + b_ref[...]
    y1 = z * s1_ref[...] + t1_ref[...]
    if act1:
        y1 = _leaky(y1, slope)
    y2 = _leaky(y1 * s2_ref[...] + t2_ref[...], slope)
    o1_ref[...] = y1
    o2_ref[...] = y2


def _conv_single_kernel(p_ref, w_ref, b_ref, s_ref, t_ref, o_ref, *, slope):
    # o = leaky((acc + b) * s + t)
    z = jnp.dot(p_ref[...], w_ref[...], preferred_element_type=jnp.float32)
    z = (z + b_ref[...]) * s_ref[...] + t_ref[...]
    o_ref[...] = _leaky(z, slope)


def _conv_residual_kernel(p_ref, w_ref, b_ref, r_ref, o_ref):
    # o = acc + b + residual
    z = jnp.dot(p_ref[...], w_ref[...], preferred_element_type=jnp.float32)
    o_ref[...] = z + b_ref[...] + r_ref[...]


def _conv_bn_conv_kernel(p_ref, w6_ref, b6_ref, r_ref, s7_ref, t7_ref,
                         w7_ref, b7_ref, o_ref):
    # conv6 (+bias +residual) -> bn7 affine -> conv7 (1x1, +bias), all fused.
    z = jnp.dot(p_ref[...], w6_ref[...], preferred_element_type=jnp.float32)
    z = z + b6_ref[...] + r_ref[...]
    z = z * s7_ref[...] + t7_ref[...]
    o_ref[...] = (jnp.dot(z, w7_ref[...], preferred_element_type=jnp.float32)
                  + b7_ref[...])


# ----------------------------------------------------------------------------
# pallas_call driver: tile over M rows, keep weights/vectors resident in VMEM.
# ----------------------------------------------------------------------------
_MAX_TM = 512  # rows per tile; plenty for these channel widths, multiple of 8


def _tile_m(M):
    return M if M <= _MAX_TM else _MAX_TM


def _row_spec(tm, c):
    return pl.BlockSpec((tm, c), lambda i: (i, 0))


def _resident_spec(shape):
    n = len(shape)
    return pl.BlockSpec(shape, lambda i: (0,) * n)


def _conv_call(kernel, patches, operands, out_couts):
    """operands: list of (array, rowwise). rowwise arrays are tiled (TM, C)
    alongside the patches/outputs; the rest stay resident across all tiles."""
    M, K = patches.shape
    tm = _tile_m(M)
    grid = (pl.cdiv(M, tm),)

    in_specs = [_row_spec(tm, K)]
    args = [patches]
    for arr, rowwise in operands:
        args.append(arr)
        if rowwise:
            in_specs.append(_row_spec(tm, arr.shape[-1]))
        else:
            in_specs.append(_resident_spec(arr.shape))

    if isinstance(out_couts, int):
        out_shape = jax.ShapeDtypeStruct((M, out_couts), jnp.float32)
        out_specs = _row_spec(tm, out_couts)
    else:
        out_shape = tuple(jax.ShapeDtypeStruct((M, c), jnp.float32)
                          for c in out_couts)
        out_specs = tuple(_row_spec(tm, c) for c in out_couts)

    return pl.pallas_call(
        kernel,
        grid=grid,
        in_specs=in_specs,
        out_specs=out_specs,
        out_shape=out_shape,
        compiler_params=pltpu.CompilerParams(
            dimension_semantics=("parallel",),
            vmem_limit_bytes=32 * 1024 * 1024,
        ),
    )(*args)


# ----------------------------------------------------------------------------
# Plain-JAX glue (im2col, padding, weight folding)
# ----------------------------------------------------------------------------
def extract_patches(x_padded_nhwc, kh, kw, stride):
    """im2col on an already-padded NHWC tensor.  Flat K index = c*kh*kw + a*kw + b
    (matches torch's (Cout, Cin, kh, kw) weight flatten)."""
    N, Hp, Wp, C = x_padded_nhwc.shape
    Ho = (Hp - kh) // stride + 1
    Wo = (Wp - kw) // stride + 1
    cols = []
    for a in range(kh):
        for b in range(kw):
            cols.append(x_padded_nhwc[:, a:a + stride * Ho:stride,
                                      b:b + stride * Wo:stride, :])
    p = jnp.stack(cols, axis=-1)                 # (N, Ho, Wo, C, kh*kw)
    p = p.reshape(N, Ho, Wo, C * kh * kw)
    return p.reshape(N * Ho * Wo, C * kh * kw), (N, Ho, Wo)


def _zero_pad(x_nhwc, pad):
    if pad == 0:
        return x_nhwc
    return jnp.pad(x_nhwc, ((0, 0), (pad, pad), (pad, pad), (0, 0)))


def _fold_bn(bn, eps=1e-5):
    gamma, beta, rmean, rvar = bn
    scale = gamma / jnp.sqrt(rvar + eps)
    shift = beta - rmean * scale
    return scale.reshape(1, -1), shift.reshape(1, -1)


def _w2d(w):
    cout = w.shape[0]
    return w.reshape(cout, -1).T                 # (Cin*kh*kw, Cout)


def _blur_conv4_weight(w4):
    """Compose BlurPool2d (outer([1,2,1])/16, depthwise) with the 1x1 conv4."""
    a = jnp.array([1.0, 2.0, 1.0], jnp.float32)
    f = jnp.outer(a, a)
    f = (f / f.sum()).reshape(-1)                # (9,), tap index = i*3 + j
    cout, cin = w4.shape[0], w4.shape[1]
    w4_2d = w4.reshape(cout, cin).T              # (Cin, Cout)
    weff = w4_2d[:, None, :] * f[None, :, None]  # (Cin, 9, Cout)
    return weff.reshape(cin * 9, cout)


# ----------------------------------------------------------------------------
# EncoderNetwork3 forward (6 fused pallas_calls)
# ----------------------------------------------------------------------------
def encoder_forward(x_nchw, params):
    p = params
    slope = 0.01
    x = jnp.transpose(x_nchw, (0, 2, 3, 1))      # NCHW -> NHWC
    ch = p["w1"].shape[0]
    ch2 = p["w4"].shape[0]
    csize = p["w7"].shape[0]

    # -- stage 1: conv1 -> out = leaky(bn1(.)),  act2 = leaky(bn2(out))
    p1, (N, H1, W1) = extract_patches(_zero_pad(x, 2), 5, 5, stride=2)
    s1, t1 = _fold_bn(p["bn1"])
    s2, t2 = _fold_bn(p["bn2"])
    out1, act2 = _conv_call(
        functools.partial(_conv_dual_kernel, slope=slope, act1=True),
        p1,
        [(_w2d(p["w1"]), False), (p["b1"].reshape(1, -1), False),
         (s1, False), (t1, False), (s2, False), (t2, False)],
        (ch, ch))

    # -- stage 2: conv2 -> leaky(bn3(.))
    a2 = act2.reshape(N, H1, W1, ch)
    p2, _ = extract_patches(_zero_pad(a2, 1), 3, 3, stride=1)
    s3, t3 = _fold_bn(p["bn3"])
    t_act = _conv_call(
        functools.partial(_conv_single_kernel, slope=slope),
        p2,
        [(_w2d(p["w2"]), False), (p["b2"].reshape(1, -1), False),
         (s3, False), (t3, False)],
        ch)

    # -- stage 3: conv3 + residual(out)
    a3 = t_act.reshape(N, H1, W1, ch)
    p3, _ = extract_patches(_zero_pad(a3, 1), 3, 3, stride=1)
    out3 = _conv_call(
        _conv_residual_kernel,
        p3,
        [(_w2d(p["w3"]), False), (p["b3"].reshape(1, -1), False),
         (out1, True)],
        ch)

    # -- stage 4: blurpool folded into conv4 (1x1); also emit leaky(bn5(.))
    o3 = out3.reshape(N, H1, W1, ch)
    o3p = jnp.pad(o3, ((0, 0), (1, 1), (1, 1), (0, 0)), mode="reflect")
    p4, (_, H2, W2) = extract_patches(o3p, 3, 3, stride=2)
    s5, t5 = _fold_bn(p["bn5"])
    ones = jnp.ones((1, ch2), jnp.float32)
    zeros = jnp.zeros((1, ch2), jnp.float32)
    out4, act5 = _conv_call(
        functools.partial(_conv_dual_kernel, slope=slope, act1=False),
        p4,
        [(_blur_conv4_weight(p["w4"]), False), (p["b4"].reshape(1, -1), False),
         (ones, False), (zeros, False), (s5, False), (t5, False)],
        (ch2, ch2))

    # -- stage 5: conv5 -> leaky(bn6(.))
    a5 = act5.reshape(N, H2, W2, ch2)
    p5, _ = extract_patches(_zero_pad(a5, 1), 3, 3, stride=1)
    s6, t6 = _fold_bn(p["bn6"])
    act6 = _conv_call(
        functools.partial(_conv_single_kernel, slope=slope),
        p5,
        [(_w2d(p["w5"]), False), (p["b5"].reshape(1, -1), False),
         (s6, False), (t6, False)],
        ch2)

    # -- stage 6: conv6 + residual(out4) -> bn7 (no leaky) -> conv7 (fused)
    a6 = act6.reshape(N, H2, W2, ch2)
    p6, _ = extract_patches(_zero_pad(a6, 1), 3, 3, stride=1)
    s7, t7 = _fold_bn(p["bn7"])
    out = _conv_call(
        _conv_bn_conv_kernel,
        p6,
        [(_w2d(p["w6"]), False), (p["b6"].reshape(1, -1), False),
         (out4, True), (s7, False), (t7, False),
         (_w2d(p["w7"]), False), (p["b7"].reshape(1, -1), False)],
        csize)

    out = out.reshape(N, H2, W2, csize)
    return jnp.transpose(out, (0, 3, 1, 2))      # NHWC -> NCHW


# ----------------------------------------------------------------------------
# Parameter init (matches the module structure at small sizes)
# ----------------------------------------------------------------------------
def init_params(key, ch=16, csize=32):
    def conv_init(k, cout, cin, ksz):
        kw_, kb_ = jax.random.split(k)
        bound = 1.0 / math.sqrt(cin * ksz * ksz)
        w = jax.random.uniform(kw_, (cout, cin, ksz, ksz), jnp.float32, -bound, bound)
        b = jax.random.uniform(kb_, (cout,), jnp.float32, -bound, bound)
        return w, b

    def bn_init(k, c):
        k1, k2, k3, k4 = jax.random.split(k, 4)
        gamma = jax.random.uniform(k1, (c,), jnp.float32, 0.5, 1.5)
        beta = 0.1 * jax.random.normal(k2, (c,), jnp.float32)
        rmean = 0.1 * jax.random.normal(k3, (c,), jnp.float32)
        rvar = jax.random.uniform(k4, (c,), jnp.float32, 0.5, 1.5)
        return gamma, beta, rmean, rvar

    ks = jax.random.split(key, 13)
    p = {}
    p["w1"], p["b1"] = conv_init(ks[0], ch, 3, 5)
    p["w2"], p["b2"] = conv_init(ks[1], ch, ch, 3)
    p["w3"], p["b3"] = conv_init(ks[2], ch, ch, 3)
    p["w4"], p["b4"] = conv_init(ks[3], ch * 2, ch, 1)
    p["w5"], p["b5"] = conv_init(ks[4], ch * 2, ch * 2, 3)
    p["w6"], p["b6"] = conv_init(ks[5], ch * 2, ch * 2, 3)
    p["w7"], p["b7"] = conv_init(ks[6], csize, ch * 2, 1)
    p["bn1"] = bn_init(ks[7], ch)
    p["bn2"] = bn_init(ks[8], ch)
    p["bn3"] = bn_init(ks[9], ch)
    p["bn5"] = bn_init(ks[10], ch * 2)
    p["bn6"] = bn_init(ks[11], ch * 2)
    p["bn7"] = bn_init(ks[12], ch * 2)
    return p


if __name__ == "__main__":
    key = jax.random.PRNGKey(0)
    kx, kp = jax.random.split(key)
    ch, csize = 16, 32                           # small, module-consistent sizes
    x = jax.random.normal(kx, (2, 3, 16, 16), jnp.float32)
    params = init_params(kp, ch=ch, csize=csize)

    out = jax.jit(encoder_forward)(x, params)
    jax.block_until_ready(out)
    assert out.shape == (2, csize, 4, 4), out.shape
    assert bool(jnp.all(jnp.isfinite(out)))
    print("KERNEL_OK")
</pallas_src>

<mosaic_0001>
module attributes {stable_mosaic.version = 11 : i64} {
  func.func @_conv_dual_kernel(%arg0: i32, %arg1: memref<128x75xf32, #tpu.memory_space<vmem>>, %arg2: memref<75x16xf32, #tpu.memory_space<vmem>>, %arg3: memref<1x16xf32, #tpu.memory_space<vmem>>, %arg4: memref<1x16xf32, #tpu.memory_space<vmem>>, %arg5: memref<1x16xf32, #tpu.memory_space<vmem>>, %arg6: memref<1x16xf32, #tpu.memory_space<vmem>>, %arg7: memref<1x16xf32, #tpu.memory_space<vmem>>, %arg8: memref<128x16xf32, #tpu.memory_space<vmem>>, %arg9: memref<128x16xf32, #tpu.memory_space<vmem>>) attributes {dimension_semantics = [#tpu.dimension_semantics<parallel>], iteration_bounds = array<i64: 1>, scalar_prefetch = 0 : i64, scratch_operands = 0 : i64, tpu.core_type = #tpu.core_type<tc>, window_params = [{transform_indices = @transform_0, window_bounds = array<i64: 128, 75>}, {pipeline_mode = #tpu.pipeline_mode<synchronous>, transform_indices = @transform_1, window_bounds = array<i64: 75, 16>}, {pipeline_mode = #tpu.pipeline_mode<synchronous>, transform_indices = @transform_2, window_bounds = array<i64: 1, 16>}, {pipeline_mode = #tpu.pipeline_mode<synchronous>, transform_indices = @transform_3, window_bounds = array<i64: 1, 16>}, {pipeline_mode = #tpu.pipeline_mode<synchronous>, transform_indices = @transform_4, window_bounds = array<i64: 1, 16>}, {pipeline_mode = #tpu.pipeline_mode<synchronous>, transform_indices = @transform_5, window_bounds = array<i64: 1, 16>}, {pipeline_mode = #tpu.pipeline_mode<synchronous>, transform_indices = @transform_6, window_bounds = array<i64: 1, 16>}, {transform_indices = @transform_7, window_bounds = array<i64: 128, 16>}, {transform_indices = @transform_8, window_bounds = array<i64: 128, 16>}]} {
    %c0 = arith.constant 0 : index
    %c0_0 = arith.constant 0 : index
    %0 = vector.load %arg1[%c0, %c0_0] : memref<128x75xf32, #tpu.memory_space<vmem>>, vector<128x75xf32>
    %c0_1 = arith.constant 0 : index
    %c0_2 = arith.constant 0 : index
    %1 = vector.load %arg2[%c0_1, %c0_2] : memref<75x16xf32, #tpu.memory_space<vmem>>, vector<75x16xf32>
    %cst = arith.constant dense<0.000000e+00> : vector<128x16xf32>
    %2 = tpu.matmul %0, %1, %cst {dimension_numbers = #tpu.dot_dimension_numbers<[1], [0], [0], [1], [0, 0, 1, 1], [], []>} : vector<128x75xf32>, vector<75x16xf32>, vector<128x16xf32> -> vector<128x16xf32>
    %c0_3 = arith.constant 0 : index
    %c0_4 = arith.constant 0 : index
    %3 = vector.load %arg3[%c0_3, %c0_4] : memref<1x16xf32, #tpu.memory_space<vmem>>, vector<1x16xf32>
    %4 = vector.broadcast %3 : vector<1x16xf32> to vector<128x16xf32>
    %5 = arith.addf %2, %4 : vector<128x16xf32>
    %c0_5 = arith.constant 0 : index
    %c0_6 = arith.constant 0 : index
    %6 = vector.load %arg4[%c0_5, %c0_6] : memref<1x16xf32, #tpu.memory_space<vmem>>, vector<1x16xf32>
    %7 = vector.broadcast %6 : vector<1x16xf32> to vector<128x16xf32>
    %8 = arith.mulf %5, %7 : vector<128x16xf32>
    %c0_7 = arith.constant 0 : index
    %c0_8 = arith.constant 0 : index
    %9 = vector.load %arg5[%c0_7, %c0_8] : memref<1x16xf32, #tpu.memory_space<vmem>>, vector<1x16xf32>
    %10 = vector.broadcast %9 : vector<1x16xf32> to vector<128x16xf32>
    %11 = arith.addf %8, %10 : vector<128x16xf32>
    %cst_9 = arith.constant 0.000000e+00 : f32
    %12 = vector.broadcast %cst_9 : f32 to vector<128x16xf32>
    %13 = arith.cmpf oge, %11, %12 : vector<128x16xf32>
    %cst_10 = arith.constant 0.00999999977 : f32
    %14 = vector.broadcast %cst_10 : f32 to vector<128x16xf32>
    %15 = arith.mulf %14, %11 : vector<128x16xf32>
    %16 = arith.select %13, %11, %15 : vector<128x16xi1>, vector<128x16xf32>
    %c0_11 = arith.constant 0 : index
    %c0_12 = arith.constant 0 : index
    %17 = vector.load %arg6[%c0_11, %c0_12] : memref<1x16xf32, #tpu.memory_space<vmem>>, vector<1x16xf32>
    %18 = vector.broadcast %17 : vector<1x16xf32> to vector<128x16xf32>
    %19 = arith.mulf %16, %18 : vector<128x16xf32>
    %c0_13 = arith.constant 0 : index
    %c0_14 = arith.constant 0 : index
    %20 = vector.load %arg7[%c0_13, %c0_14] : memref<1x16xf32, #tpu.memory_space<vmem>>, vector<1x16xf32>
    %21 = vector.broadcast %20 : vector<1x16xf32> to vector<128x16xf32>
    %22 = arith.addf %19, %21 : vector<128x16xf32>
    %cst_15 = arith.constant 0.000000e+00 : f32
    %23 = vector.broadcast %cst_15 : f32 to vector<128x16xf32>
    %24 = arith.cmpf oge, %22, %23 : vector<128x16xf32>
    %cst_16 = arith.constant 0.00999999977 : f32
    %25 = vector.broadcast %cst_16 : f32 to vector<128x16xf32>
    %26 = arith.mulf %25, %22 : vector<128x16xf32>
    %27 = arith.select %24, %22, %26 : vector<128x16xi1>, vector<128x16xf32>
    %c0_17 = arith.constant 0 : index
    %c0_18 = arith.constant 0 : index
    %28 = vector.load %arg8[%c0_17, %c0_18] : memref<128x16xf32, #tpu.memory_space<vmem>>, vector<128x16xf32>
    tpu.vector_store %arg8[%c0_17, %c0_18], %16 {strides = array<i32>} : memref<128x16xf32, #tpu.memory_space<vmem>>, vector<128x16xf32>,
    %c0_19 = arith.constant 0 : index
    %c0_20 = arith.constant 0 : index
    %29 = vector.load %arg9[%c0_19, %c0_20] : memref<128x16xf32, #tpu.memory_space<vmem>>, vector<128x16xf32>
    tpu.vector_store %arg9[%c0_19, %c0_20], %27 {strides = array<i32>} : memref<128x16xf32, #tpu.memory_space<vmem>>, vector<128x16xf32>,
    return
  }
  func.func @transform_0(%arg0: i32) -> (i32, i32) {
    %c0_i32 = arith.constant 0 : i32
    %c0_i32_0 = arith.constant 0 : i32
    return %arg0, %c0_i32 : i32, i32
  }
  func.func @transform_1(%arg0: i32) -> (i32, i32) {
    %c0_i32 = arith.constant 0 : i32
    %c0_i32_0 = arith.constant 0 : i32
    %c0_i32_1 = arith.constant 0 : i32
    return %c0_i32, %c0_i32_0 : i32, i32
  }
  func.func @transform_2(%arg0: i32) -> (i32, i32) {
    %c0_i32 = arith.constant 0 : i32
    %c0_i32_0 = arith.constant 0 : i32
    %c0_i32_1 = arith.constant 0 : i32
    return %c0_i32, %c0_i32_0 : i32, i32
  }
  func.func @transform_3(%arg0: i32) -> (i32, i32) {
    %c0_i32 = arith.constant 0 : i32
    %c0_i32_0 = arith.constant 0 : i32
    %c0_i32_1 = arith.constant 0 : i32
    return %c0_i32, %c0_i32_0 : i32, i32
  }
  func.func @transform_4(%arg0: i32) -> (i32, i32) {
    %c0_i32 = arith.constant 0 : i32
    %c0_i32_0 = arith.constant 0 : i32
    %c0_i32_1 = arith.constant 0 : i32
    return %c0_i32, %c0_i32_0 : i32, i32
  }
  func.func @transform_5(%arg0: i32) -> (i32, i32) {
    %c0_i32 = arith.constant 0 : i32
    %c0_i32_0 = arith.constant 0 : i32
    %c0_i32_1 = arith.constant 0 : i32
    return %c0_i32, %c0_i32_0 : i32, i32
  }
  func.func @transform_6(%arg0: i32) -> (i32, i32) {
    %c0_i32 = arith.constant 0 : i32
    %c0_i32_0 = arith.constant 0 : i32
    %c0_i32_1 = arith.constant 0 : i32
    return %c0_i32, %c0_i32_0 : i32, i32
  }
  func.func @transform_7(%arg0: i32) -> (i32, i32) {
    %c0_i32 = arith.constant 0 : i32
    %c0_i32_0 = arith.constant 0 : i32
    return %arg0, %c0_i32 : i32, i32
  }
  func.func @transform_8(%arg0: i32) -> (i32, i32) {
    %c0_i32 = arith.constant 0 : i32
    %c0_i32_0 = arith.constant 0 : i32
    return %arg0, %c0_i32 : i32, i32
  }
}

module attributes {stable_mosaic.version = 11 : i64} {
  func.func @_conv_single_kernel(%arg0: i32, %arg1: memref<128x144xf32, #tpu.memory_space<vmem>>, %arg2: memref<144x16xf32, #tpu.memory_space<vmem>>, %arg3: memref<1x16xf32, #tpu.memory_space<vmem>>, %arg4: memref<1x16xf32, #tpu.memory_space<vmem>>, %arg5: memref<1x16xf32, #tpu.memory_space<vmem>>, %arg6: memref<128x16xf32, #tpu.memory_space<vmem>>) attributes {dimension_semantics = [#tpu.dimension_semantics<parallel>], iteration_bounds = array<i64: 1>, scalar_prefetch = 0 : i64, scratch_operands = 0 : i64, tpu.core_type = #tpu.core_type<tc>, window_params = [{transform_indices = @transform_0, window_bounds = array<i64: 128, 144>}, {pipeline_mode = #tpu.pipeline_mode<synchronous>, transform_indices = @transform_1, window_bounds = array<i64: 144, 16>}, {pipeline_mode = #tpu.pipeline_mode<synchronous>, transform_indices = @transform_2, window_bounds = array<i64: 1, 16>}, {pipeline_mode = #tpu.pipeline_mode<synchronous>, transform_indices = @transform_3, window_bounds = array<i64: 1, 16>}, {pipeline_mode = #tpu.pipeline_mode<synchronous>, transform_indices = @transform_4, window_bounds = array<i64: 1, 16>}, {transform_indices = @transform_5, window_bounds = array<i64: 128, 16>}]} {
    %c0 = arith.constant 0 : index
    %c0_0 = arith.constant 0 : index
    %0 = vector.load %arg1[%c0, %c0_0] : memref<128x144xf32, #tpu.memory_space<vmem>>, vector<128x144xf32>
    %c0_1 = arith.constant 0 : index
    %c0_2 = arith.constant 0 : index
    %1 = vector.load %arg2[%c0_1, %c0_2] : memref<144x16xf32, #tpu.memory_space<vmem>>, vector<144x16xf32>
    %cst = arith.constant dense<0.000000e+00> : vector<128x16xf32>
    %2 = tpu.matmul %0, %1, %cst {dimension_numbers = #tpu.dot_dimension_numbers<[1], [0], [0], [1], [0, 0, 1, 1], [], []>} : vector<128x144xf32>, vector<144x16xf32>, vector<128x16xf32> -> vector<128x16xf32>
    %c0_3 = arith.constant 0 : index
    %c0_4 = arith.constant 0 : index
    %3 = vector.load %arg3[%c0_3, %c0_4] : memref<1x16xf32, #tpu.memory_space<vmem>>, vector<1x16xf32>
    %4 = vector.broadcast %3 : vector<1x16xf32> to vector<128x16xf32>
    %5 = arith.addf %2, %4 : vector<128x16xf32>
    %c0_5 = arith.constant 0 : index
    %c0_6 = arith.constant 0 : index
    %6 = vector.load %arg4[%c0_5, %c0_6] : memref<1x16xf32, #tpu.memory_space<vmem>>, vector<1x16xf32>
    %7 = vector.broadcast %6 : vector<1x16xf32> to vector<128x16xf32>
    %8 = arith.mulf %5, %7 : vector<128x16xf32>
    %c0_7 = arith.constant 0 : index
    %c0_8 = arith.constant 0 : index
    %9 = vector.load %arg5[%c0_7, %c0_8] : memref<1x16xf32, #tpu.memory_space<vmem>>, vector<1x16xf32>
    %10 = vector.broadcast %9 : vector<1x16xf32> to vector<128x16xf32>
    %11 = arith.addf %8, %10 : vector<128x16xf32>
    %cst_9 = arith.constant 0.000000e+00 : f32
    %12 = vector.broadcast %cst_9 : f32 to vector<128x16xf32>
    %13 = arith.cmpf oge, %11, %12 : vector<128x16xf32>
    %cst_10 = arith.constant 0.00999999977 : f32
    %14 = vector.broadcast %cst_10 : f32 to vector<128x16xf32>
    %15 = arith.mulf %14, %11 : vector<128x16xf32>
    %16 = arith.select %13, %11, %15 : vector<128x16xi1>, vector<128x16xf32>
    %c0_11 = arith.constant 0 : index
    %c0_12 = arith.constant 0 : index
    %17 = vector.load %arg6[%c0_11, %c0_12] : memref<128x16xf32, #tpu.memory_space<vmem>>, vector<128x16xf32>
    tpu.vector_store %arg6[%c0_11, %c0_12], %16 {strides = array<i32>} : memref<128x16xf32, #tpu.memory_space<vmem>>, vector<128x16xf32>,
    return
  }
  func.func @transform_0(%arg0: i32) -> (i32, i32) {
    %c0_i32 = arith.constant 0 : i32
    %c0_i32_0 = arith.constant 0 : i32
    return %arg0, %c0_i32 : i32, i32
  }
  func.func @transform_1(%arg0: i32) -> (i32, i32) {
    %c0_i32 = arith.constant 0 : i32
    %c0_i32_0 = arith.constant 0 : i32
    %c0_i32_1 = arith.constant 0 : i32
    return %c0_i32, %c0_i32_0 : i32, i32
  }
  func.func @transform_2(%arg0: i32) -> (i32, i32) {
    %c0_i32 = arith.constant 0 : i32
    %c0_i32_0 = arith.constant 0 : i32
    %c0_i32_1 = arith.constant 0 : i32
    return %c0_i32, %c0_i32_0 : i32, i32
  }
  func.func @transform_3(%arg0: i32) -> (i32, i32) {
    %c0_i32 = arith.constant 0 : i32
    %c0_i32_0 = arith.constant 0 : i32
    %c0_i32_1 = arith.constant 0 : i32
    return %c0_i32, %c0_i32_0 : i32, i32
  }
  func.func @transform_4(%arg0: i32) -> (i32, i32) {
    %c0_i32 = arith.constant 0 : i32
    %c0_i32_0 = arith.constant 0 : i32
    %c0_i32_1 = arith.constant 0 : i32
    return %c0_i32, %c0_i32_0 : i32, i32
  }
  func.func @transform_5(%arg0: i32) -> (i32, i32) {
    %c0_i32 = arith.constant 0 : i32
    %c0_i32_0 = arith.constant 0 : i32
    return %arg0, %c0_i32 : i32, i32
  }
}

module attributes {stable_mosaic.version = 11 : i64} {
  func.func @_conv_residual_kernel(%arg0: i32, %arg1: memref<128x144xf32, #tpu.memory_space<vmem>>, %arg2: memref<144x16xf32, #tpu.memory_space<vmem>>, %arg3: memref<1x16xf32, #tpu.memory_space<vmem>>, %arg4: memref<128x16xf32, #tpu.memory_space<vmem>>, %arg5: memref<128x16xf32, #tpu.memory_space<vmem>>) attributes {dimension_semantics = [#tpu.dimension_semantics<parallel>], iteration_bounds = array<i64: 1>, scalar_prefetch = 0 : i64, scratch_operands = 0 : i64, tpu.core_type = #tpu.core_type<tc>, window_params = [{transform_indices = @transform_0, window_bounds = array<i64: 128, 144>}, {pipeline_mode = #tpu.pipeline_mode<synchronous>, transform_indices = @transform_1, window_bounds = array<i64: 144, 16>}, {pipeline_mode = #tpu.pipeline_mode<synchronous>, transform_indices = @transform_2, window_bounds = array<i64: 1, 16>}, {transform_indices = @transform_3, window_bounds = array<i64: 128, 16>}, {transform_indices = @transform_4, window_bounds = array<i64: 128, 16>}]} {
    %c0 = arith.constant 0 : index
    %c0_0 = arith.constant 0 : index
    %0 = vector.load %arg1[%c0, %c0_0] : memref<128x144xf32, #tpu.memory_space<vmem>>, vector<128x144xf32>
    %c0_1 = arith.constant 0 : index
    %c0_2 = arith.constant 0 : index
    %1 = vector.load %arg2[%c0_1, %c0_2] : memref<144x16xf32, #tpu.memory_space<vmem>>, vector<144x16xf32>
    %cst = arith.constant dense<0.000000e+00> : vector<128x16xf32>
    %2 = tpu.matmul %0, %1, %cst {dimension_numbers = #tpu.dot_dimension_numbers<[1], [0], [0], [1], [0, 0, 1, 1], [], []>} : vector<128x144xf32>, vector<144x16xf32>, vector<128x16xf32> -> vector<128x16xf32>
    %c0_3 = arith.constant 0 : index
    %c0_4 = arith.constant 0 : index
    %3 = vector.load %arg3[%c0_3, %c0_4] : memref<1x16xf32, #tpu.memory_space<vmem>>, vector<1x16xf32>
    %4 = vector.broadcast %3 : vector<1x16xf32> to vector<128x16xf32>
    %5 = arith.addf %2, %4 : vector<128x16xf32>
    %c0_5 = arith.constant 0 : index
    %c0_6 = arith.constant 0 : index
    %6 = vector.load %arg4[%c0_5, %c0_6] : memref<128x16xf32, #tpu.memory_space<vmem>>, vector<128x16xf32>
    %7 = arith.addf %5, %6 : vector<128x16xf32>
    %c0_7 = arith.constant 0 : index
    %c0_8 = arith.constant 0 : index
    %8 = vector.load %arg5[%c0_7, %c0_8] : memref<128x16xf32, #tpu.memory_space<vmem>>, vector<128x16xf32>
    tpu.vector_store %arg5[%c0_7, %c0_8], %7 {strides = array<i32>} : memref<128x16xf32, #tpu.memory_space<vmem>>, vector<128x16xf32>,
    return
  }
  func.func @transform_0(%arg0: i32) -> (i32, i32) {
    %c0_i32 = arith.constant 0 : i32
    %c0_i32_0 = arith.constant 0 : i32
    return %arg0, %c0_i32 : i32, i32
  }
  func.func @transform_1(%arg0: i32) -> (i32, i32) {
    %c0_i32 = arith.constant 0 : i32
    %c0_i32_0 = arith.constant 0 : i32
    %c0_i32_1 = arith.constant 0 : i32
    return %c0_i32, %c0_i32_0 : i32, i32
  }
  func.func @transform_2(%arg0: i32) -> (i32, i32) {
    %c0_i32 = arith.constant 0 : i32
    %c0_i32_0 = arith.constant 0 : i32
    %c0_i32_1 = arith.constant 0 : i32
    return %c0_i32, %c0_i32_0 : i32, i32
  }
  func.func @transform_3(%arg0: i32) -> (i32, i32) {
    %c0_i32 = arith.constant 0 : i32
    %c0_i32_0 = arith.constant 0 : i32
    return %arg0, %c0_i32 : i32, i32
  }
  func.func @transform_4(%arg0: i32) -> (i32, i32) {
    %c0_i32 = arith.constant 0 : i32
    %c0_i32_0 = arith.constant 0 : i32
    return %arg0, %c0_i32 : i32, i32
  }
}

module attributes {stable_mosaic.version = 11 : i64} {
  func.func @_conv_dual_kernel(%arg0: i32, %arg1: memref<32x144xf32, #tpu.memory_space<vmem>>, %arg2: memref<144x32xf32, #tpu.memory_space<vmem>>, %arg3: memref<1x32xf32, #tpu.memory_space<vmem>>, %arg4: memref<1x32xf32, #tpu.memory_space<vmem>>, %arg5: memref<1x32xf32, #tpu.memory_space<vmem>>, %arg6: memref<1x32xf32, #tpu.memory_space<vmem>>, %arg7: memref<1x32xf32, #tpu.memory_space<vmem>>, %arg8: memref<32x32xf32, #tpu.memory_space<vmem>>, %arg9: memref<32x32xf32, #tpu.memory_space<vmem>>) attributes {dimension_semantics = [#tpu.dimension_semantics<parallel>], iteration_bounds = array<i64: 1>, scalar_prefetch = 0 : i64, scratch_operands = 0 : i64, tpu.core_type = #tpu.core_type<tc>, window_params = [{transform_indices = @transform_0, window_bounds = array<i64: 32, 144>}, {pipeline_mode = #tpu.pipeline_mode<synchronous>, transform_indices = @transform_1, window_bounds = array<i64: 144, 32>}, {pipeline_mode = #tpu.pipeline_mode<synchronous>, transform_indices = @transform_2, window_bounds = array<i64: 1, 32>}, {pipeline_mode = #tpu.pipeline_mode<synchronous>, transform_indices = @transform_3, window_bounds = array<i64: 1, 32>}, {pipeline_mode = #tpu.pipeline_mode<synchronous>, transform_indices = @transform_4, window_bounds = array<i64: 1, 32>}, {pipeline_mode = #tpu.pipeline_mode<synchronous>, transform_indices = @transform_5, window_bounds = array<i64: 1, 32>}, {pipeline_mode = #tpu.pipeline_mode<synchronous>, transform_indices = @transform_6, window_bounds = array<i64: 1, 32>}, {transform_indices = @transform_7, window_bounds = array<i64: 32, 32>}, {transform_indices = @transform_8, window_bounds = array<i64: 32, 32>}]} {
    %c0 = arith.constant 0 : index
    %c0_0 = arith.constant 0 : index
    %0 = vector.load %arg1[%c0, %c0_0] : memref<32x144xf32, #tpu.memory_space<vmem>>, vector<32x144xf32>
    %c0_1 = arith.constant 0 : index
    %c0_2 = arith.constant 0 : index
    %1 = vector.load %arg2[%c0_1, %c0_2] : memref<144x32xf32, #tpu.memory_space<vmem>>, vector<144x32xf32>
    %cst = arith.constant dense<0.000000e+00> : vector<32x32xf32>
    %2 = tpu.matmul %0, %1, %cst {dimension_numbers = #tpu.dot_dimension_numbers<[1], [0], [0], [1], [0, 0, 1, 1], [], []>} : vector<32x144xf32>, vector<144x32xf32>, vector<32x32xf32> -> vector<32x32xf32>
    %c0_3 = arith.constant 0 : index
    %c0_4 = arith.constant 0 : index
    %3 = vector.load %arg3[%c0_3, %c0_4] : memref<1x32xf32, #tpu.memory_space<vmem>>, vector<1x32xf32>
    %4 = vector.broadcast %3 : vector<1x32xf32> to vector<32x32xf32>
    %5 = arith.addf %2, %4 : vector<32x32xf32>
    %c0_5 = arith.constant 0 : index
    %c0_6 = arith.constant 0 : index
    %6 = vector.load %arg4[%c0_5, %c0_6] : memref<1x32xf32, #tpu.memory_space<vmem>>, vector<1x32xf32>
    %7 = vector.broadcast %6 : vector<1x32xf32> to vector<32x32xf32>
    %8 = arith.mulf %5, %7 : vector<32x32xf32>
    %c0_7 = arith.constant 0 : index
    %c0_8 = arith.constant 0 : index
    %9 = vector.load %arg5[%c0_7, %c0_8] : memref<1x32xf32, #tpu.memory_space<vmem>>, vector<1x32xf32>
    %10 = vector.broadcast %9 : vector<1x32xf32> to vector<32x32xf32>
    %11 = arith.addf %8, %10 : vector<32x32xf32>
    %c0_9 = arith.constant 0 : index
    %c0_10 = arith.constant 0 : index
    %12 = vector.load %arg6[%c0_9, %c0_10] : memref<1x32xf32, #tpu.memory_space<vmem>>, vector<1x32xf32>
    %13 = vector.broadcast %12 : vector<1x32xf32> to vector<32x32xf32>
    %14 = arith.mulf %11, %13 : vector<32x32xf32>
    %c0_11 = arith.constant 0 : index
    %c0_12 = arith.constant 0 : index
    %15 = vector.load %arg7[%c0_11, %c0_12] : memref<1x32xf32, #tpu.memory_space<vmem>>, vector<1x32xf32>
    %16 = vector.broadcast %15 : vector<1x32xf32> to vector<32x32xf32>
    %17 = arith.addf %14, %16 : vector<32x32xf32>
    %cst_13 = arith.constant 0.000000e+00 : f32
    %18 = vector.broadcast %cst_13 : f32 to vector<32x32xf32>
    %19 = arith.cmpf oge, %17, %18 : vector<32x32xf32>
    %cst_14 = arith.constant 0.00999999977 : f32
    %20 = vector.broadcast %cst_14 : f32 to vector<32x32xf32>
    %21 = arith.mulf %20, %17 : vector<32x32xf32>
    %22 = arith.select %19, %17, %21 : vector<32x32xi1>, vector<32x32xf32>
    %c0_15 = arith.constant 0 : index
    %c0_16 = arith.constant 0 : index
    %23 = vector.load %arg8[%c0_15, %c0_16] : memref<32x32xf32, #tpu.memory_space<vmem>>, vector<32x32xf32>
    tpu.vector_store %arg8[%c0_15, %c0_16], %11 {strides = array<i32>} : memref<32x32xf32, #tpu.memory_space<vmem>>, vector<32x32xf32>,
    %c0_17 = arith.constant 0 : index
    %c0_18 = arith.constant 0 : index
    %24 = vector.load %arg9[%c0_17, %c0_18] : memref<32x32xf32, #tpu.memory_space<vmem>>, vector<32x32xf32>
    tpu.vector_store %arg9[%c0_17, %c0_18], %22 {strides = array<i32>} : memref<32x32xf32, #tpu.memory_space<vmem>>, vector<32x32xf32>,
    return
  }
  func.func @transform_0(%arg0: i32) -> (i32, i32) {
    %c0_i32 = arith.constant 0 : i32
    %c0_i32_0 = arith.constant 0 : i32
    return %arg0, %c0_i32 : i32, i32
  }
  func.func @transform_1(%arg0: i32) -> (i32, i32) {
    %c0_i32 = arith.constant 0 : i32
    %c0_i32_0 = arith.constant 0 : i32
    %c0_i32_1 = arith.constant 0 : i32
    return %c0_i32, %c0_i32_0 : i32, i32
  }
  func.func @transform_2(%arg0: i32) -> (i32, i32) {
    %c0_i32 = arith.constant 0 : i32
    %c0_i32_0 = arith.constant 0 : i32
    %c0_i32_1 = arith.constant 0 : i32
    return %c0_i32, %c0_i32_0 : i32, i32
  }
  func.func @transform_3(%arg0: i32) -> (i32, i32) {
    %c0_i32 = arith.constant 0 : i32
    %c0_i32_0 = arith.constant 0 : i32
    %c0_i32_1 = arith.constant 0 : i32
    return %c0_i32, %c0_i32_0 : i32, i32
  }
  func.func @transform_4(%arg0: i32) -> (i32, i32) {
    %c0_i32 = arith.constant 0 : i32
    %c0_i32_0 = arith.constant 0 : i32
    %c0_i32_1 = arith.constant 0 : i32
    return %c0_i32, %c0_i32_0 : i32, i32
  }
  func.func @transform_5(%arg0: i32) -> (i32, i32) {
    %c0_i32 = arith.constant 0 : i32
    %c0_i32_0 = arith.constant 0 : i32
    %c0_i32_1 = arith.constant 0 : i32
    return %c0_i32, %c0_i32_0 : i32, i32
  }
  func.func @transform_6(%arg0: i32) -> (i32, i32) {
    %c0_i32 = arith.constant 0 : i32
    %c0_i32_0 = arith.constant 0 : i32
    %c0_i32_1 = arith.constant 0 : i32
    return %c0_i32, %c0_i32_0 : i32, i32
  }
  func.func @transform_7(%arg0: i32) -> (i32, i32) {
    %c0_i32 = arith.constant 0 : i32
    %c0_i32_0 = arith.constant 0 : i32
    return %arg0, %c0_i32 : i32, i32
  }
  func.func @transform_8(%arg0: i32) -> (i32, i32) {
    %c0_i32 = arith.constant 0 : i32
    %c0_i32_0 = arith.constant 0 : i32
    return %arg0, %c0_i32 : i32, i32
  }
}

module attributes {stable_mosaic.version = 11 : i64} {
  func.func @_conv_single_kernel(%arg0: i32, %arg1: memref<32x288xf32, #tpu.memory_space<vmem>>, %arg2: memref<288x32xf32, #tpu.memory_space<vmem>>, %arg3: memref<1x32xf32, #tpu.memory_space<vmem>>, %arg4: memref<1x32xf32, #tpu.memory_space<vmem>>, %arg5: memref<1x32xf32, #tpu.memory_space<vmem>>, %arg6: memref<32x32xf32, #tpu.memory_space<vmem>>) attributes {dimension_semantics = [#tpu.dimension_semantics<parallel>], iteration_bounds = array<i64: 1>, scalar_prefetch = 0 : i64, scratch_operands = 0 : i64, tpu.core_type = #tpu.core_type<tc>, window_params = [{transform_indices = @transform_0, window_bounds = array<i64: 32, 288>}, {pipeline_mode = #tpu.pipeline_mode<synchronous>, transform_indices = @transform_1, window_bounds = array<i64: 288, 32>}, {pipeline_mode = #tpu.pipeline_mode<synchronous>, transform_indices = @transform_2, window_bounds = array<i64: 1, 32>}, {pipeline_mode = #tpu.pipeline_mode<synchronous>, transform_indices = @transform_3, window_bounds = array<i64: 1, 32>}, {pipeline_mode = #tpu.pipeline_mode<synchronous>, transform_indices = @transform_4, window_bounds = array<i64: 1, 32>}, {transform_indices = @transform_5, window_bounds = array<i64: 32, 32>}]} {
    %c0 = arith.constant 0 : index
    %c0_0 = arith.constant 0 : index
    %0 = vector.load %arg1[%c0, %c0_0] : memref<32x288xf32, #tpu.memory_space<vmem>>, vector<32x288xf32>
    %c0_1 = arith.constant 0 : index
    %c0_2 = arith.constant 0 : index
    %1 = vector.load %arg2[%c0_1, %c0_2] : memref<288x32xf32, #tpu.memory_space<vmem>>, vector<288x32xf32>
    %cst = arith.constant dense<0.000000e+00> : vector<32x32xf32>
    %2 = tpu.matmul %0, %1, %cst {dimension_numbers = #tpu.dot_dimension_numbers<[1], [0], [0], [1], [0, 0, 1, 1], [], []>} : vector<32x288xf32>, vector<288x32xf32>, vector<32x32xf32> -> vector<32x32xf32>
    %c0_3 = arith.constant 0 : index
    %c0_4 = arith.constant 0 : index
    %3 = vector.load %arg3[%c0_3, %c0_4] : memref<1x32xf32, #tpu.memory_space<vmem>>, vector<1x32xf32>
    %4 = vector.broadcast %3 : vector<1x32xf32> to vector<32x32xf32>
    %5 = arith.addf %2, %4 : vector<32x32xf32>
    %c0_5 = arith.constant 0 : index
    %c0_6 = arith.constant 0 : index
    %6 = vector.load %arg4[%c0_5, %c0_6] : memref<1x32xf32, #tpu.memory_space<vmem>>, vector<1x32xf32>
    %7 = vector.broadcast %6 : vector<1x32xf32> to vector<32x32xf32>
    %8 = arith.mulf %5, %7 : vector<32x32xf32>
    %c0_7 = arith.constant 0 : index
    %c0_8 = arith.constant 0 : index
    %9 = vector.load %arg5[%c0_7, %c0_8] : memref<1x32xf32, #tpu.memory_space<vmem>>, vector<1x32xf32>
    %10 = vector.broadcast %9 : vector<1x32xf32> to vector<32x32xf32>
    %11 = arith.addf %8, %10 : vector<32x32xf32>
    %cst_9 = arith.constant 0.000000e+00 : f32
    %12 = vector.broadcast %cst_9 : f32 to vector<32x32xf32>
    %13 = arith.cmpf oge, %11, %12 : vector<32x32xf32>
    %cst_10 = arith.constant 0.00999999977 : f32
    %14 = vector.broadcast %cst_10 : f32 to vector<32x32xf32>
    %15 = arith.mulf %14, %11 : vector<32x32xf32>
    %16 = arith.select %13, %11, %15 : vector<32x32xi1>, vector<32x32xf32>
    %c0_11 = arith.constant 0 : index
    %c0_12 = arith.constant 0 : index
    %17 = vector.load %arg6[%c0_11, %c0_12] : memref<32x32xf32, #tpu.memory_space<vmem>>, vector<32x32xf32>
    tpu.vector_store %arg6[%c0_11, %c0_12], %16 {strides = array<i32>} : memref<32x32xf32, #tpu.memory_space<vmem>>, vector<32x32xf32>,
    return
  }
  func.func @transform_0(%arg0: i32) -> (i32, i32) {
    %c0_i32 = arith.constant 0 : i32
    %c0_i32_0 = arith.constant 0 : i32
    return %arg0, %c0_i32 : i32, i32
  }
  func.func @transform_1(%arg0: i32) -> (i32, i32) {
    %c0_i32 = arith.constant 0 : i32
    %c0_i32_0 = arith.constant 0 : i32
    %c0_i32_1 = arith.constant 0 : i32
    return %c0_i32, %c0_i32_0 : i32, i32
  }
  func.func @transform_2(%arg0: i32) -> (i32, i32) {
    %c0_i32 = arith.constant 0 : i32
    %c0_i32_0 = arith.constant 0 : i32
    %c0_i32_1 = arith.constant 0 : i32
    return %c0_i32, %c0_i32_0 : i32, i32
  }
  func.func @transform_3(%arg0: i32) -> (i32, i32) {
    %c0_i32 = arith.constant 0 : i32
    %c0_i32_0 = arith.constant 0 : i32
    %c0_i32_1 = arith.constant 0 : i32
    return %c0_i32, %c0_i32_0 : i32, i32
  }
  func.func @transform_4(%arg0: i32) -> (i32, i32) {
    %c0_i32 = arith.constant 0 : i32
    %c0_i32_0 = arith.constant 0 : i32
    %c0_i32_1 = arith.constant 0 : i32
    return %c0_i32, %c0_i32_0 : i32, i32
  }
  func.func @transform_5(%arg0: i32) -> (i32, i32) {
    %c0_i32 = arith.constant 0 : i32
    %c0_i32_0 = arith.constant 0 : i32
    return %arg0, %c0_i32 : i32, i32
  }
}

module attributes {stable_mosaic.version = 11 : i64} {
  func.func @_conv_bn_conv_kernel(%arg0: i32, %arg1: memref<32x288xf32, #tpu.memory_space<vmem>>, %arg2: memref<288x32xf32, #tpu.memory_space<vmem>>, %arg3: memref<1x32xf32, #tpu.memory_space<vmem>>, %arg4: memref<32x32xf32, #tpu.memory_space<vmem>>, %arg5: memref<1x32xf32, #tpu.memory_space<vmem>>, %arg6: memref<1x32xf32, #tpu.memory_space<vmem>>, %arg7: memref<32x32xf32, #tpu.memory_space<vmem>>, %arg8: memref<1x32xf32, #tpu.memory_space<vmem>>, %arg9: memref<32x32xf32, #tpu.memory_space<vmem>>) attributes {dimension_semantics = [#tpu.dimension_semantics<parallel>], iteration_bounds = array<i64: 1>, scalar_prefetch = 0 : i64, scratch_operands = 0 : i64, tpu.core_type = #tpu.core_type<tc>, window_params = [{transform_indices = @transform_0, window_bounds = array<i64: 32, 288>}, {pipeline_mode = #tpu.pipeline_mode<synchronous>, transform_indices = @transform_1, window_bounds = array<i64: 288, 32>}, {pipeline_mode = #tpu.pipeline_mode<synchronous>, transform_indices = @transform_2, window_bounds = array<i64: 1, 32>}, {transform_indices = @transform_3, window_bounds = array<i64: 32, 32>}, {pipeline_mode = #tpu.pipeline_mode<synchronous>, transform_indices = @transform_4, window_bounds = array<i64: 1, 32>}, {pipeline_mode = #tpu.pipeline_mode<synchronous>, transform_indices = @transform_5, window_bounds = array<i64: 1, 32>}, {pipeline_mode = #tpu.pipeline_mode<synchronous>, transform_indices = @transform_6, window_bounds = array<i64: 32, 32>}, {pipeline_mode = #tpu.pipeline_mode<synchronous>, transform_indices = @transform_7, window_bounds = array<i64: 1, 32>}, {transform_indices = @transform_8, window_bounds = array<i64: 32, 32>}]} {
    %c0 = arith.constant 0 : index
    %c0_0 = arith.constant 0 : index
    %0 = vector.load %arg1[%c0, %c0_0] : memref<32x288xf32, #tpu.memory_space<vmem>>, vector<32x288xf32>
    %c0_1 = arith.constant 0 : index
    %c0_2 = arith.constant 0 : index
    %1 = vector.load %arg2[%c0_1, %c0_2] : memref<288x32xf32, #tpu.memory_space<vmem>>, vector<288x32xf32>
    %cst = arith.constant dense<0.000000e+00> : vector<32x32xf32>
    %2 = tpu.matmul %0, %1, %cst {dimension_numbers = #tpu.dot_dimension_numbers<[1], [0], [0], [1], [0, 0, 1, 1], [], []>} : vector<32x288xf32>, vector<288x32xf32>, vector<32x32xf32> -> vector<32x32xf32>
    %c0_3 = arith.constant 0 : index
    %c0_4 = arith.constant 0 : index
    %3 = vector.load %arg3[%c0_3, %c0_4] : memref<1x32xf32, #tpu.memory_space<vmem>>, vector<1x32xf32>
    %4 = vector.broadcast %3 : vector<1x32xf32> to vector<32x32xf32>
    %5 = arith.addf %2, %4 : vector<32x32xf32>
    %c0_5 = arith.constant 0 : index
    %c0_6 = arith.constant 0 : index
    %6 = vector.load %arg4[%c0_5, %c0_6] : memref<32x32xf32, #tpu.memory_space<vmem>>, vector<32x32xf32>
    %7 = arith.addf %5, %6 : vector<32x32xf32>
    %c0_7 = arith.constant 0 : index
    %c0_8 = arith.constant 0 : index
    %8 = vector.load %arg5[%c0_7, %c0_8] : memref<1x32xf32, #tpu.memory_space<vmem>>, vector<1x32xf32>
    %9 = vector.broadcast %8 : vector<1x32xf32> to vector<32x32xf32>
    %10 = arith.mulf %7, %9 : vector<32x32xf32>
    %c0_9 = arith.constant 0 : index
    %c0_10 = arith.constant 0 : index
    %11 = vector.load %arg6[%c0_9, %c0_10] : memref<1x32xf32, #tpu.memory_space<vmem>>, vector<1x32xf32>
    %12 = vector.broadcast %11 : vector<1x32xf32> to vector<32x32xf32>
    %13 = arith.addf %10, %12 : vector<32x32xf32>
    %c0_11 = arith.constant 0 : index
    %c0_12 = arith.constant 0 : index
    %14 = vector.load %arg7[%c0_11, %c0_12] : memref<32x32xf32, #tpu.memory_space<vmem>>, vector<32x32xf32>
    %cst_13 = arith.constant dense<0.000000e+00> : vector<32x32xf32>
    %15 = tpu.matmul %13, %14, %cst_13 {dimension_numbers = #tpu.dot_dimension_numbers<[1], [0], [0], [1], [0, 0, 1, 1], [], []>} : vector<32x32xf32>, vector<32x32xf32>, vector<32x32xf32> -> vector<32x32xf32>
    %c0_14 = arith.constant 0 : index
    %c0_15 = arith.constant 0 : index
    %16 = vector.load %arg8[%c0_14, %c0_15] : memref<1x32xf32, #tpu.memory_space<vmem>>, vector<1x32xf32>
    %17 = vector.broadcast %16 : vector<1x32xf32> to vector<32x32xf32>
    %18 = arith.addf %15, %17 : vector<32x32xf32>
    %c0_16 = arith.constant 0 : index
    %c0_17 = arith.constant 0 : index
    %19 = vector.load %arg9[%c0_16, %c0_17] : memref<32x32xf32, #tpu.memory_space<vmem>>, vector<32x32xf32>
    tpu.vector_store %arg9[%c0_16, %c0_17], %18 {strides = array<i32>} : memref<32x32xf32, #tpu.memory_space<vmem>>, vector<32x32xf32>,
    return
  }
  func.func @transform_0(%arg0: i32) -> (i32, i32) {
    %c0_i32 = arith.constant 0 : i32
    %c0_i32_0 = arith.constant 0 : i32
    return %arg0, %c0_i32 : i32, i32
  }
  func.func @transform_1(%arg0: i32) -> (i32, i32) {
    %c0_i32 = arith.constant 0 : i32
    %c0_i32_0 = arith.constant 0 : i32
    %c0_i32_1 = arith.constant 0 : i32
    return %c0_i32, %c0_i32_0 : i32, i32
  }
  func.func @transform_2(%arg0: i32) -> (i32, i32) {
    %c0_i32 = arith.constant 0 : i32
    %c0_i32_0 = arith.constant 0 : i32
    %c0_i32_1 = arith.constant 0 : i32
    return %c0_i32, %c0_i32_0 : i32, i32
  }
  func.func @transform_3(%arg0: i32) -> (i32, i32) {
    %c0_i32 = arith.constant 0 : i32
    %c0_i32_0 = arith.constant 0 : i32
    return %arg0, %c0_i32 : i32, i32
  }
  func.func @transform_4(%arg0: i32) -> (i32, i32) {
    %c0_i32 = arith.constant 0 : i32
    %c0_i32_0 = arith.constant 0 : i32
    %c0_i32_1 = arith.constant 0 : i32
    return %c0_i32, %c0_i32_0 : i32, i32
  }
  func.func @transform_5(%arg0: i32) -> (i32, i32) {
    %c0_i32 = arith.constant 0 : i32
    %c0_i32_0 = arith.constant 0 : i32
    %c0_i32_1 = arith.constant 0 : i32
    return %c0_i32, %c0_i32_0 : i32, i32
  }
  func.func @transform_6(%arg0: i32) -> (i32, i32) {
    %c0_i32 = arith.constant 0 : i32
    %c0_i32_0 = arith.constant 0 : i32
    %c0_i32_1 = arith.constant 0 : i32
    return %c0_i32, %c0_i32_0 : i32, i32
  }
  func.func @transform_7(%arg0: i32) -> (i32, i32) {
    %c0_i32 = arith.constant 0 : i32
    %c0_i32_0 = arith.constant 0 : i32
    %c0_i32_1 = arith.constant 0 : i32
    return %c0_i32, %c0_i32_0 : i32, i32
  }
  func.func @transform_8(%arg0: i32) -> (i32, i32) {
    %c0_i32 = arith.constant 0 : i32
    %c0_i32_0 = arith.constant 0 : i32
    return %arg0, %c0_i32 : i32, i32
  }
}

</mosaic_0001>

<llo_original>
// kernel: encoder_forward.6
$region0: #{encoder_forward.6}
  #allocation0 [shape = 'u32[]', space=smem, size = 0x4, offset = 0x4, fixed_abs, tag = 'smem constant byte address 0x4 - core index']
  #allocation1 [shape = 'u32[144,128]{1,0:T(1,128)}', space=vmem, size = 0x12000, scoped, tag = 'internal scratch']
  %s0 = inlined_call_operand.vmem [shape: f32[128,75], index: 0, kind: input, shape index: {}]
  %s1 = inlined_call_operand.vmem [shape: f32[75,16], index: 1, kind: input, shape index: {}]
  %s2 = inlined_call_operand.vmem [shape: f32[1,16], index: 2, kind: input, shape index: {}]
  %s3 = inlined_call_operand.vmem [shape: f32[1,16], index: 3, kind: input, shape index: {}]
  %s4 = inlined_call_operand.vmem [shape: f32[1,16], index: 4, kind: input, shape index: {}]
  %s5 = inlined_call_operand.vmem [shape: f32[1,16], index: 5, kind: input, shape index: {}]
  %s6 = inlined_call_operand.vmem [shape: f32[1,16], index: 6, kind: input, shape index: {}]
  %s7 = inlined_call_operand.vmem [shape: f32[128,16], index: 7, kind: output, shape index: {0}]
  %s8 = inlined_call_operand.vmem [shape: f32[128,16], index: 8, kind: output, shape index: {1}]
  %9 = xla_tuple %s7, %s8
  %s10 = sld [smem:[#allocation0]]
  $region46: #{encoder_forward.6} parent=0
    _
  %s12 = ssub.s32 1, %s10
  %s13 = scalar_select 0, %s12, %s10
  // Predicated region
  $region2: #{encoder_forward.6} parent=0 // pred_check
    _
  $region3: #{encoder_forward.6} parent=0 // pred_check_branch
    %15 = sbr.rel (0) target = $region5
  $region4: #{encoder_forward.6} parent=0 // pred_region
    _
  $region5: #{encoder_forward.6} parent=0 // pred_fallthru
    _
  // Predicated region
  $region6: #{encoder_forward.6} parent=0 // pred_check
    _
  $region7: #{encoder_forward.6} parent=0 // pred_check_branch
    %17 = sbr.rel (0) target = $region9
  $region8: #{encoder_forward.6} parent=0 // pred_region
    _
  $region9: #{encoder_forward.6} parent=0 // pred_fallthru
    _
  // Predicated region
  $region10: #{encoder_forward.6} parent=0 // pred_check
    _
  $region11: #{encoder_forward.6} parent=0 // pred_check_branch
    %19 = sbr.rel (0) target = $region13
  $region12: #{encoder_forward.6} parent=0 // pred_region
    _
  $region13: #{encoder_forward.6} parent=0 // pred_fallthru
    _
  // Predicated region
  $region14: #{encoder_forward.6} parent=0 // pred_check
    _
  $region15: #{encoder_forward.6} parent=0 // pred_check_branch
    %21 = sbr.rel (0) target = $region17
  $region16: #{encoder_forward.6} parent=0 // pred_region
    _
  $region17: #{encoder_forward.6} parent=0 // pred_fallthru
    _
  // Predicated region
  $region18: #{encoder_forward.6} parent=0 // pred_check
    _
  $region19: #{encoder_forward.6} parent=0 // pred_check_branch
    %23 = sbr.rel (0) target = $region21
  $region20: #{encoder_forward.6} parent=0 // pred_region
    _
  $region21: #{encoder_forward.6} parent=0 // pred_fallthru
    _
  // Predicated region
  $region22: #{encoder_forward.6} parent=0 // pred_check
    _
  $region23: #{encoder_forward.6} parent=0 // pred_check_branch
    %25 = sbr.rel (0) target = $region25
  $region24: #{encoder_forward.6} parent=0 // pred_region
    _
  $region25: #{encoder_forward.6} parent=0 // pred_fallthru
    _
  // Predicated region
  $region26: #{encoder_forward.6} parent=0 // pred_check
    _
  $region27: #{encoder_forward.6} parent=0 // pred_check_branch
    %27 = sbr.rel (0) target = $region29
  $region28: #{encoder_forward.6} parent=0 // pred_region
    _
  $region29: #{encoder_forward.6} parent=0 // pred_fallthru
    _
  %v28 = vld [vmem:[%s0] sm:$0xff]
  %v29 = vld [vmem:[%s0 + $0x8] sm:$0xff]
  %v30 = vld [vmem:[%s0 + $0x10] sm:$0xff]
  %v31 = vld [vmem:[%s0 + $0x18] sm:$0xff]
  %v32 = vld [vmem:[%s0 + $0x20] sm:$0xff]
  %v33 = vld [vmem:[%s0 + $0x28] sm:$0xff]
  %v34 = vld [vmem:[%s0 + $0x30] sm:$0xff]
  %v35 = vld [vmem:[%s0 + $0x38] sm:$0xff]
  %v36 = vld [vmem:[%s0 + $0x40] sm:$0xff]
  %v37 = vld [vmem:[%s0 + $0x48] sm:$0xff]
  %v38 = vld [vmem:[%s0 + $0x50] sm:$0xff]
  %v39 = vld [vmem:[%s0 + $0x58] sm:$0xff]
  %v40 = vld [vmem:[%s0 + $0x60] sm:$0xff]
  %v41 = vld [vmem:[%s0 + $0x68] sm:$0xff]
  %v42 = vld [vmem:[%s0 + $0x70] sm:$0xff]
  %v43 = vld [vmem:[%s0 + $0x78] sm:$0xff]
  %v44 = vld [vmem:[%s1] sm:$0xff]
  %v45 = vld [vmem:[%s1 + $0x8] sm:$0xff]
  %v46 = vld [vmem:[%s1 + $0x10] sm:$0xff]
  %v47 = vld [vmem:[%s1 + $0x18] sm:$0xff]
  %v48 = vld [vmem:[%s1 + $0x20] sm:$0xff]
  %v49 = vld [vmem:[%s1 + $0x28] sm:$0xff]
  %v50 = vld [vmem:[%s1 + $0x30] sm:$0xff]
  %v51 = vld [vmem:[%s1 + $0x38] sm:$0xff]
  %v52 = vld [vmem:[%s1 + $0x40] sm:$0xff]
  %v53 = vld [vmem:[%s1 + $0x48] sm:$0x7]
  %v54 = vld [vmem:[%s2] sm:$0x1]
  %v56 = vlaneseq
  %v57 = vshrl.u32 %v56, 7
  %v58 = vsub.s32 0, %v57
  %v59 = vrot.slane %v54, %v58
  %vm61 = vcmask 613376
  %v63 = vsel %vm61, %v28, 0
  %v66 = vsel %vm61, %v29, 0
  %v69 = vsel %vm61, %v30, 0
  %v72 = vsel %vm61, %v31, 0
  %v75 = vsel %vm61, %v32, 0
  %v78 = vsel %vm61, %v33, 0
  %v81 = vsel %vm61, %v34, 0
  %v84 = vsel %vm61, %v35, 0
  %v87 = vsel %vm61, %v36, 0
  %v90 = vsel %vm61, %v37, 0
  %v93 = vsel %vm61, %v38, 0
  %v96 = vsel %vm61, %v39, 0
  %v99 = vsel %vm61, %v40, 0
  %v102 = vsel %vm61, %v41, 0
  %v105 = vsel %vm61, %v42, 0
  %v108 = vsel %vm61, %v43, 0
  %vm110 = vcmask 1042432
  %v112 = vsel %vm110, %v53, 0
  %114 = vmatprep.subr.mxu0 0.0
  %115 = vmatpush1.msra.mxu0 %v44
  %116 = vmatprep.subr.mxu0 0.0
  %117 = vmatpush1.msra.mxu0 %v45
  %118 = vmatprep.subr.mxu0 0.0
  %119 = vmatpush1.msra.mxu0 %v46
  %120 = vmatprep.subr.mxu0 0.0
  %121 = vmatpush1.msra.mxu0 %v47
  %122 = vmatprep.subr.mxu0 0.0
  %123 = vmatpush1.msra.mxu0 %v48
  %124 = vmatprep.subr.mxu0 0.0
  %125 = vmatpush1.msra.mxu0 %v49
  %126 = vmatprep.subr.mxu0 0.0
  %127 = vmatpush1.msra.mxu0 %v50
  %128 = vmatprep.subr.mxu0 0.0
  %129 = vmatpush1.msra.mxu0 %v51
  %130 = vmatprep.subr.mxu0 0.0
  %131 = vmatpush1.msra.mxu0 %v52
  %132 = vmatprep.subr.mxu0 0.0
  %133 = vmatpush1.msra.mxu0 %v112
  %134 = vmatprep.subr.mxu0 0.0
  %135 = vmatpush1.msra.mxu0 0.0
  %136 = vmatprep.subr.mxu0 0.0
  %137 = vmatpush1.msra.mxu0 0.0
  %138 = vmatprep.subr.mxu0 0.0
  %139 = vmatpush1.msra.mxu0 0.0
  %140 = vmatprep.subr.mxu0 0.0
  %141 = vmatpush1.msra.mxu0 0.0
  %142 = vmatprep.subr.mxu0 0.0
  %143 = vmatpush1.msra.mxu0 0.0
  %144 = vmatprep.subr.mxu0 0.0
  %145 = vmatpush1.msra.mxu0 0.0
  %146 = vmatprep.subr.mxu0 0.0
  %147 = vmatpush1.msra.mxu0 0.0
  %148 = vmatprep.subr.mxu0 0.0
  %149 = vmatpush1.msra.mxu0 0.0
  %150 = vmatprep.subr.mxu0 0.0
  %151 = vmatpush1.msra.mxu0 0.0
  %152 = vmatprep.subr.mxu0 0.0
  %153 = vmatpush1.msra.mxu0 0.0
  %154 = vmatprep.subr.mxu0 0.0
  %155 = vmatpush1.msra.mxu0 0.0
  %156 = vmatprep.subr.mxu0 0.0
  %157 = vmatpush1.msra.mxu0 0.0
  %158 = vmatprep.subr.mxu0 0.0
  %159 = vmatpush1.msra.mxu0 0.0
  %160 = vmatprep.subr.mxu0 0.0
  %161 = vmatpush1.msra.mxu0 0.0
  %162 = vmatprep.subr.mxu0 0.0
  %163 = vmatpush1.msra.mxu0 0.0
  %164 = vmatprep.subr.mxu0 0.0
  %165 = vmatpush1.msra.mxu0 0.0
  %166 = vmatprep.subr.mxu0 0.0
  %167 = vmatpush1.msra.mxu0 0.0
  %168 = vmatprep.subr.mxu0 0.0
  %169 = vmatpush1.msra.mxu0 0.0
  %170 = vmatprep.subr.mxu0 0.0
  %171 = vmatpush1.msra.mxu0 0.0
  %172 = vmatprep.subr.mxu0 0.0
  %173 = vmatpush1.msra.mxu0 0.0
  %174 = vmatprep.subr.mxu0 0.0
  %175 = vmatpush1.msra.mxu0 0.0
  %176 = vmatprep.subr.mxu0 0.0
  %177 = vmatpush1.msra.mxu0 0.0
  %178 = vmatprep.mubr.f32.mxu0 0.0
  %179 = vmatmul.mubr.f32.gmra.mrb[0].mxu0 %v63
  %v180 = vpop.f32.mrb[0].mxu0
  %v181 = vadd.f32 %v59, %v180
  %v182 = vpop.f32.mrb[0].mxu0
  %183 = vmatprep.mubr.f32.mxu0 0.0
  %184 = vmatmul.mubr.f32.gmra.mrb[0].mxu0 %v66
  %v185 = vpop.f32.mrb[0].mxu0
  %v186 = vadd.f32 %v59, %v185
  %v187 = vpop.f32.mrb[0].mxu0
  %188 = vmatprep.mubr.f32.mxu0 0.0
  %189 = vmatmul.mubr.f32.gmra.mrb[0].mxu0 %v69
  %v190 = vpop.f32.mrb[0].mxu0
  %v191 = vadd.f32 %v59, %v190
  %v192 = vpop.f32.mrb[0].mxu0
  %193 = vmatprep.mubr.f32.mxu0 0.0
  %194 = vmatmul.mubr.f32.gmra.mrb[0].mxu0 %v72
  %v195 = vpop.f32.mrb[0].mxu0
  %v196 = vadd.f32 %v59, %v195
  %v197 = vpop.f32.mrb[0].mxu0
  %198 = vmatprep.mubr.f32.mxu0 0.0
  %199 = vmatmul.mubr.f32.gmra.mrb[0].mxu0 %v75
  %v200 = vpop.f32.mrb[0].mxu0
  %v201 = vadd.f32 %v59, %v200
  %v202 = vpop.f32.mrb[0].mxu0
  %203 = vmatprep.mubr.f32.mxu0 0.0
  %204 = vmatmul.mubr.f32.gmra.mrb[0].mxu0 %v78
  %v205 = vpop.f32.mrb[0].mxu0
  %v206 = vadd.f32 %v59, %v205
  %v207 = vpop.f32.mrb[0].mxu0
  %208 = vmatprep.mubr.f32.mxu0 0.0
  %209 = vmatmul.mubr.f32.gmra.mrb[0].mxu0 %v81
  %v210 = vpop.f32.mrb[0].mxu0
  %v211 = vadd.f32 %v59, %v210
  %v212 = vpop.f32.mrb[0].mxu0
  %213 = vmatprep.mubr.f32.mxu0 0.0
  %214 = vmatmul.mubr.f32.gmra.mrb[0].mxu0 %v84
  %v215 = vpop.f32.mrb[0].mxu0
  %v216 = vadd.f32 %v59, %v215
  %v217 = vpop.f32.mrb[0].mxu0
  %218 = vmatprep.mubr.f32.mxu0 0.0
  %219 = vmatmul.mubr.f32.gmra.mrb[0].mxu0 %v87
  %v220 = vpop.f32.mrb[0].mxu0
  %v221 = vadd.f32 %v59, %v220
  %v222 = vpop.f32.mrb[0].mxu0
  %223 = vmatprep.mubr.f32.mxu0 0.0
  %224 = vmatmul.mubr.f32.gmra.mrb[0].mxu0 %v90
  %v225 = vpop.f32.mrb[0].mxu0
  %v226 = vadd.f32 %v59, %v225
  %v227 = vpop.f32.mrb[0].mxu0
  %228 = vmatprep.mubr.f32.mxu0 0.0
  %229 = vmatmul.mubr.f32.gmra.mrb[0].mxu0 %v93
  %v230 = vpop.f32.mrb[0].mxu0
  %v231 = vadd.f32 %v59, %v230
  %v232 = vpop.f32.mrb[0].mxu0
  %233 = vmatprep.mubr.f32.mxu0 0.0
  %234 = vmatmul.mubr.f32.gmra.mrb[0].mxu0 %v96
  %v235 = vpop.f32.mrb[0].mxu0
  %v236 = vadd.f32 %v59, %v235
  %v237 = vpop.f32.mrb[0].mxu0
  %238 = vmatprep.mubr.f32.mxu0 0.0
  %239 = vmatmul.mubr.f32.gmra.mrb[0].mxu0 %v99
  %v240 = vpop.f32.mrb[0].mxu0
  %v241 = vadd.f32 %v59, %v240
  %v242 = vpop.f32.mrb[0].mxu0
  %243 = vmatprep.mubr.f32.mxu0 0.0
  %244 = vmatmul.mubr.f32.gmra.mrb[0].mxu0 %v102
  %v245 = vpop.f32.mrb[0].mxu0
  %v246 = vadd.f32 %v59, %v245
  %v247 = vpop.f32.mrb[0].mxu0
  %248 = vmatprep.mubr.f32.mxu0 0.0
  %249 = vmatmul.mubr.f32.gmra.mrb[0].mxu0 %v105
  %v250 = vpop.f32.mrb[0].mxu0
  %v251 = vadd.f32 %v59, %v250
  %v252 = vpop.f32.mrb[0].mxu0
  %253 = vmatprep.mubr.f32.mxu0 0.0
  %254 = vmatmul.mubr.f32.gmra.mrb[0].mxu0 %v108
  %v255 = vpop.f32.mrb[0].mxu0
  %v256 = vadd.f32 %v59, %v255
  %v257 = vpop.f32.mrb[0].mxu0
  %258 = vdwg.mxu0
  %v259 = vld [vmem:[%s3] sm:$0x1]
  %v261 = vlaneseq
  %v262 = vshrl.u32 %v261, 7
  %v263 = vsub.s32 0, %v262
  %v264 = vrot.slane %v259, %v263
  %v266 = vmul.f32 %v181, %v264
  %v267 = vmul.f32 %v186, %v264
  %v268 = vmul.f32 %v191, %v264
  %v269 = vmul.f32 %v196, %v264
  %v270 = vmul.f32 %v201, %v264
  %v271 = vmul.f32 %v206, %v264
  %v272 = vmul.f32 %v211, %v264
  %v273 = vmul.f32 %v216, %v264
  %v274 = vmul.f32 %v221, %v264
  %v275 = vmul.f32 %v226, %v264
  %v276 = vmul.f32 %v231, %v264
  %v277 = vmul.f32 %v236, %v264
  %v278 = vmul.f32 %v241, %v264
  %v279 = vmul.f32 %v246, %v264
  %v280 = vmul.f32 %v251, %v264
  %v281 = vmul.f32 %v256, %v264
  %v282 = vld [vmem:[%s4] sm:$0x1]
  %v284 = vlaneseq
  %v285 = vshrl.u32 %v284, 7
  %v286 = vsub.s32 0, %v285
  %v287 = vrot.slane %v282, %v286
  %v289 = vadd.f32 %v266, %v287
  %v290 = vadd.f32 %v267, %v287
  %v291 = vadd.f32 %v268, %v287
  %v292 = vadd.f32 %v269, %v287
  %v293 = vadd.f32 %v270, %v287
  %v294 = vadd.f32 %v271, %v287
  %v295 = vadd.f32 %v272, %v287
  %v296 = vadd.f32 %v273, %v287
  %v297 = vadd.f32 %v274, %v287
  %v298 = vadd.f32 %v275, %v287
  %v299 = vadd.f32 %v276, %v287
  %v300 = vadd.f32 %v277, %v287
  %v301 = vadd.f32 %v278, %v287
  %v302 = vadd.f32 %v279, %v287
  %v303 = vadd.f32 %v280, %v287
  %v304 = vadd.f32 %v281, %v287
  %vm305 = vcmp.ge.f32.partialorder %v289, 0.0
  %vm306 = vcmp.ge.f32.partialorder %v290, 0.0
  %vm307 = vcmp.ge.f32.partialorder %v291, 0.0
  %vm308 = vcmp.ge.f32.partialorder %v292, 0.0
  %vm309 = vcmp.ge.f32.partialorder %v293, 0.0
  %vm310 = vcmp.ge.f32.partialorder %v294, 0.0
  %vm311 = vcmp.ge.f32.partialorder %v295, 0.0
  %vm312 = vcmp.ge.f32.partialorder %v296, 0.0
  %vm313 = vcmp.ge.f32.partialorder %v297, 0.0
  %vm314 = vcmp.ge.f32.partialorder %v298, 0.0
  %vm315 = vcmp.ge.f32.partialorder %v299, 0.0
  %vm316 = vcmp.ge.f32.partialorder %v300, 0.0
  %vm317 = vcmp.ge.f32.partialorder %v301, 0.0
  %vm318 = vcmp.ge.f32.partialorder %v302, 0.0
  %vm319 = vcmp.ge.f32.partialorder %v303, 0.0
  %vm320 = vcmp.ge.f32.partialorder %v304, 0.0
  %v321 = vmul.f32 %v289, 0.01
  %v322 = vmul.f32 %v290, 0.01
  %v323 = vmul.f32 %v291, 0.01
  %v324 = vmul.f32 %v292, 0.01
  %v325 = vmul.f32 %v293, 0.01
  %v326 = vmul.f32 %v294, 0.01
  %v327 = vmul.f32 %v295, 0.01
  %v328 = vmul.f32 %v296, 0.01
  %v329 = vmul.f32 %v297, 0.01
  %v330 = vmul.f32 %v298, 0.01
  %v331 = vmul.f32 %v299, 0.01
  %v332 = vmul.f32 %v300, 0.01
  %v333 = vmul.f32 %v301, 0.01
  %v334 = vmul.f32 %v302, 0.01
  %v335 = vmul.f32 %v303, 0.01
  %v336 = vmul.f32 %v304, 0.01
  %v337 = vsel %vm305, %v289, %v321
  %v338 = vsel %vm306, %v290, %v322
  %v339 = vsel %vm307, %v291, %v323
  %v340 = vsel %vm308, %v292, %v324
  %v341 = vsel %vm309, %v293, %v325
  %v342 = vsel %vm310, %v294, %v326
  %v343 = vsel %vm311, %v295, %v327
  %v344 = vsel %vm312, %v296, %v328
  %v345 = vsel %vm313, %v297, %v329
  %v346 = vsel %vm314, %v298, %v330
  %v347 = vsel %vm315, %v299, %v331
  %v348 = vsel %vm316, %v300, %v332
  %v349 = vsel %vm317, %v301, %v333
  %v350 = vsel %vm318, %v302, %v334
  %v351 = vsel %vm319, %v303, %v335
  %v352 = vsel %vm320, %v304, %v336
  %v353 = vld [vmem:[%s5] sm:$0x1]
  %v355 = vlaneseq
  %v356 = vshrl.u32 %v355, 7
  %v357 = vsub.s32 0, %v356
  %v358 = vrot.slane %v353, %v357
  %v360 = vmul.f32 %v337, %v358
  %v361 = vmul.f32 %v338, %v358
  %v362 = vmul.f32 %v339, %v358
  %v363 = vmul.f32 %v340, %v358
  %v364 = vmul.f32 %v341, %v358
  %v365 = vmul.f32 %v342, %v358
  %v366 = vmul.f32 %v343, %v358
  %v367 = vmul.f32 %v344, %v358
  %v368 = vmul.f32 %v345, %v358
  %v369 = vmul.f32 %v346, %v358
  %v370 = vmul.f32 %v347, %v358
  %v371 = vmul.f32 %v348, %v358
  %v372 = vmul.f32 %v349, %v358
  %v373 = vmul.f32 %v350, %v358
  %v374 = vmul.f32 %v351, %v358
  %v375 = vmul.f32 %v352, %v358
  %v376 = vld [vmem:[%s6] sm:$0x1]
  %v378 = vlaneseq
  %v379 = vshrl.u32 %v378, 7
  %v380 = vsub.s32 0, %v379
  %v381 = vrot.slane %v376, %v380
  %v383 = vadd.f32 %v360, %v381
  %v384 = vadd.f32 %v361, %v381
  %v385 = vadd.f32 %v362, %v381
  %v386 = vadd.f32 %v363, %v381
  %v387 = vadd.f32 %v364, %v381
  %v388 = vadd.f32 %v365, %v381
  %v389 = vadd.f32 %v366, %v381
  %v390 = vadd.f32 %v367, %v381
  %v391 = vadd.f32 %v368, %v381
  %v392 = vadd.f32 %v369, %v381
  %v393 = vadd.f32 %v370, %v381
  %v394 = vadd.f32 %v371, %v381
  %v395 = vadd.f32 %v372, %v381
  %v396 = vadd.f32 %v373, %v381
  %v397 = vadd.f32 %v374, %v381
  %v398 = vadd.f32 %v375, %v381
  %vm399 = vcmp.ge.f32.partialorder %v383, 0.0
  %vm400 = vcmp.ge.f32.partialorder %v384, 0.0
  %vm401 = vcmp.ge.f32.partialorder %v385, 0.0
  %vm402 = vcmp.ge.f32.partialorder %v386, 0.0
  %vm403 = vcmp.ge.f32.partialorder %v387, 0.0
  %vm404 = vcmp.ge.f32.partialorder %v388, 0.0
  %vm405 = vcmp.ge.f32.partialorder %v389, 0.0
  %vm406 = vcmp.ge.f32.partialorder %v390, 0.0
  %vm407 = vcmp.ge.f32.partialorder %v391, 0.0
  %vm408 = vcmp.ge.f32.partialorder %v392, 0.0
  %vm409 = vcmp.ge.f32.partialorder %v393, 0.0
  %vm410 = vcmp.ge.f32.partialorder %v394, 0.0
  %vm411 = vcmp.ge.f32.partialorder %v395, 0.0
  %vm412 = vcmp.ge.f32.partialorder %v396, 0.0
  %vm413 = vcmp.ge.f32.partialorder %v397, 0.0
  %vm414 = vcmp.ge.f32.partialorder %v398, 0.0
  %v415 = vmul.f32 %v383, 0.01
  %v416 = vmul.f32 %v384, 0.01
  %v417 = vmul.f32 %v385, 0.01
  %v418 = vmul.f32 %v386, 0.01
  %v419 = vmul.f32 %v387, 0.01
  %v420 = vmul.f32 %v388, 0.01
  %v421 = vmul.f32 %v389, 0.01
  %v422 = vmul.f32 %v390, 0.01
  %v423 = vmul.f32 %v391, 0.01
  %v424 = vmul.f32 %v392, 0.01
  %v425 = vmul.f32 %v393, 0.01
  %v426 = vmul.f32 %v394, 0.01
  %v427 = vmul.f32 %v395, 0.01
  %v428 = vmul.f32 %v396, 0.01
  %v429 = vmul.f32 %v397, 0.01
  %v430 = vmul.f32 %v398, 0.01
  %v431 = vsel %vm399, %v383, %v415
  %v432 = vsel %vm400, %v384, %v416
  %v433 = vsel %vm401, %v385, %v417
  %v434 = vsel %vm402, %v386, %v418
  %v435 = vsel %vm403, %v387, %v419
  %v436 = vsel %vm404, %v388, %v420
  %v437 = vsel %vm405, %v389, %v421
  %v438 = vsel %vm406, %v390, %v422
  %v439 = vsel %vm407, %v391, %v423
  %v440 = vsel %vm408, %v392, %v424
  %v441 = vsel %vm409, %v393, %v425
  %v442 = vsel %vm410, %v394, %v426
  %v443 = vsel %vm411, %v395, %v427
  %v444 = vsel %vm412, %v396, %v428
  %v445 = vsel %vm413, %v397, %v429
  %v446 = vsel %vm414, %v398, %v430
  %vm447 = vcmask 130048
  %448 = vst.msk [vmem:[%s7] sm:$0xff] %vm447, %v337
  %449 = vst.msk [vmem:[%s7 + $0x8] sm:$0xff] %vm447, %v338
  %450 = vst.msk [vmem:[%s7 + $0x10] sm:$0xff] %vm447, %v339
  %451 = vst.msk [vmem:[%s7 + $0x18] sm:$0xff] %vm447, %v340
  %452 = vst.msk [vmem:[%s7 + $0x20] sm:$0xff] %vm447, %v341
  %453 = vst.msk [vmem:[%s7 + $0x28] sm:$0xff] %vm447, %v342
  %454 = vst.msk [vmem:[%s7 + $0x30] sm:$0xff] %vm447, %v343
  %455 = vst.msk [vmem:[%s7 + $0x38] sm:$0xff] %vm447, %v344
  %456 = vst.msk [vmem:[%s7 + $0x40] sm:$0xff] %vm447, %v345
  %457 = vst.msk [vmem:[%s7 + $0x48] sm:$0xff] %vm447, %v346
  %458 = vst.msk [vmem:[%s7 + $0x50] sm:$0xff] %vm447, %v347
  %459 = vst.msk [vmem:[%s7 + $0x58] sm:$0xff] %vm447, %v348
  %460 = vst.msk [vmem:[%s7 + $0x60] sm:$0xff] %vm447, %v349
  %461 = vst.msk [vmem:[%s7 + $0x68] sm:$0xff] %vm447, %v350
  %462 = vst.msk [vmem:[%s7 + $0x70] sm:$0xff] %vm447, %v351
  %463 = vst.msk [vmem:[%s7 + $0x78] sm:$0xff] %vm447, %v352
  %464 = vst.msk [vmem:[%s8] sm:$0xff] %vm447, %v431
  %465 = vst.msk [vmem:[%s8 + $0x8] sm:$0xff] %vm447, %v432
  %466 = vst.msk [vmem:[%s8 + $0x10] sm:$0xff] %vm447, %v433
  %467 = vst.msk [vmem:[%s8 + $0x18] sm:$0xff] %vm447, %v434
  %468 = vst.msk [vmem:[%s8 + $0x20] sm:$0xff] %vm447, %v435
  %469 = vst.msk [vmem:[%s8 + $0x28] sm:$0xff] %vm447, %v436
  %470 = vst.msk [vmem:[%s8 + $0x30] sm:$0xff] %vm447, %v437
  %471 = vst.msk [vmem:[%s8 + $0x38] sm:$0xff] %vm447, %v438
  %472 = vst.msk [vmem:[%s8 + $0x40] sm:$0xff] %vm447, %v439
  %473 = vst.msk [vmem:[%s8 + $0x48] sm:$0xff] %vm447, %v440
  %474 = vst.msk [vmem:[%s8 + $0x50] sm:$0xff] %vm447, %v441
  %475 = vst.msk [vmem:[%s8 + $0x58] sm:$0xff] %vm447, %v442
  %476 = vst.msk [vmem:[%s8 + $0x60] sm:$0xff] %vm447, %v443
  %477 = vst.msk [vmem:[%s8 + $0x68] sm:$0xff] %vm447, %v444
  %478 = vst.msk [vmem:[%s8 + $0x70] sm:$0xff] %vm447, %v445
  %479 = vst.msk [vmem:[%s8 + $0x78] sm:$0xff] %vm447, %v446
  // Predicated region
  $region30: #{encoder_forward.6} parent=0 // pred_check
    _
  $region31: #{encoder_forward.6} parent=0 // pred_check_branch
    %481 = sbr.rel (0) target = $region33
  $region32: #{encoder_forward.6} parent=0 // pred_region
    _
  $region33: #{encoder_forward.6} parent=0 // pred_fallthru
    _
  // Predicated region
  $region34: #{encoder_forward.6} parent=0 // pred_check
    _
  $region35: #{encoder_forward.6} parent=0 // pred_check_branch
    %483 = sbr.rel (0) target = $region37
  $region36: #{encoder_forward.6} parent=0 // pred_region
    _
  $region37: #{encoder_forward.6} parent=0 // pred_fallthru
    _
  // Predicated region
  $region38: #{encoder_forward.6} parent=0 // pred_check
    _
  $region39: #{encoder_forward.6} parent=0 // pred_check_branch
    %485 = sbr.rel (0) target = $region41
  $region40: #{encoder_forward.6} parent=0 // pred_region
    _
  $region41: #{encoder_forward.6} parent=0 // pred_fallthru
    _
  // Predicated region
  $region42: #{encoder_forward.6} parent=0 // pred_check
    _
  $region43: #{encoder_forward.6} parent=0 // pred_check_branch
    %487 = sbr.rel (0) target = $region45
  $region44: #{encoder_forward.6} parent=0 // pred_region
    _
  $region45: #{encoder_forward.6} parent=0 // pred_fallthru
    _

// kernel: encoder_forward.8
$region0: #{encoder_forward.8}
  #allocation0 [shape = 'u32[]', space=smem, size = 0x4, offset = 0x4, fixed_abs, tag = 'smem constant byte address 0x4 - core index']
  #allocation1 [shape = 'u32[144,128]{1,0:T(1,128)}', space=vmem, size = 0x12000, scoped, tag = 'internal scratch']
  %s0 = inlined_call_operand.vmem [shape: f32[128,144], index: 0, kind: input, shape index: {}]
  %s1 = inlined_call_operand.vmem [shape: f32[144,16], index: 1, kind: input, shape index: {}]
  %s2 = inlined_call_operand.vmem [shape: f32[1,16], index: 2, kind: input, shape index: {}]
  %s3 = inlined_call_operand.vmem [shape: f32[128,16], index: 3, kind: input, shape index: {}]
  %s4 = inlined_call_operand.vmem [shape: f32[128,16], index: 4, kind: output, shape index: {}]
  %s5 = sld [smem:[#allocation0]]
  $region26: #{encoder_forward.8} parent=0
    _
  %s7 = ssub.s32 1, %s5
  %s8 = scalar_select 0, %s7, %s5
  // Predicated region
  $region2: #{encoder_forward.8} parent=0 // pred_check
    _
  $region3: #{encoder_forward.8} parent=0 // pred_check_branch
    %10 = sbr.rel (0) target = $region5
  $region4: #{encoder_forward.8} parent=0 // pred_region
    _
  $region5: #{encoder_forward.8} parent=0 // pred_fallthru
    _
  // Predicated region
  $region6: #{encoder_forward.8} parent=0 // pred_check
    _
  $region7: #{encoder_forward.8} parent=0 // pred_check_branch
    %12 = sbr.rel (0) target = $region9
  $region8: #{encoder_forward.8} parent=0 // pred_region
    _
  $region9: #{encoder_forward.8} parent=0 // pred_fallthru
    _
  // Predicated region
  $region10: #{encoder_forward.8} parent=0 // pred_check
    _
  $region11: #{encoder_forward.8} parent=0 // pred_check_branch
    %14 = sbr.rel (0) target = $region13
  $region12: #{encoder_forward.8} parent=0 // pred_region
    _
  $region13: #{encoder_forward.8} parent=0 // pred_fallthru
    _
  // Predicated region
  $region14: #{encoder_forward.8} parent=0 // pred_check
    _
  $region15: #{encoder_forward.8} parent=0 // pred_check_branch
    %16 = sbr.rel (0) target = $region17
  $region16: #{encoder_forward.8} parent=0 // pred_region
    _
  $region17: #{encoder_forward.8} parent=0 // pred_fallthru
    _
  %v17 = vld [vmem:[%s0] sm:$0xff]
  %v18 = vld [vmem:[%s0 + $0x8] sm:$0xff]
  %v19 = vld [vmem:[%s0 + $0x10] sm:$0xff]
  %v20 = vld [vmem:[%s0 + $0x18] sm:$0xff]
  %v21 = vld [vmem:[%s0 + $0x20] sm:$0xff]
  %v22 = vld [vmem:[%s0 + $0x28] sm:$0xff]
  %v23 = vld [vmem:[%s0 + $0x30] sm:$0xff]
  %v24 = vld [vmem:[%s0 + $0x38] sm:$0xff]
  %v25 = vld [vmem:[%s0 + $0x40] sm:$0xff]
  %v26 = vld [vmem:[%s0 + $0x48] sm:$0xff]
  %v27 = vld [vmem:[%s0 + $0x50] sm:$0xff]
  %v28 = vld [vmem:[%s0 + $0x58] sm:$0xff]
  %v29 = vld [vmem:[%s0 + $0x60] sm:$0xff]
  %v30 = vld [vmem:[%s0 + $0x68] sm:$0xff]
  %v31 = vld [vmem:[%s0 + $0x70] sm:$0xff]
  %v32 = vld [vmem:[%s0 + $0x78] sm:$0xff]
  %v33 = vld [vmem:[%s0 + $0x80] sm:$0xff]
  %v34 = vld [vmem:[%s0 + $0x88] sm:$0xff]
  %v35 = vld [vmem:[%s0 + $0x90] sm:$0xff]
  %v36 = vld [vmem:[%s0 + $0x98] sm:$0xff]
  %v37 = vld [vmem:[%s0 + $0xa0] sm:$0xff]
  %v38 = vld [vmem:[%s0 + $0xa8] sm:$0xff]
  %v39 = vld [vmem:[%s0 + $0xb0] sm:$0xff]
  %v40 = vld [vmem:[%s0 + $0xb8] sm:$0xff]
  %v41 = vld [vmem:[%s0 + $0xc0] sm:$0xff]
  %v42 = vld [vmem:[%s0 + $0xc8] sm:$0xff]
  %v43 = vld [vmem:[%s0 + $0xd0] sm:$0xff]
  %v44 = vld [vmem:[%s0 + $0xd8] sm:$0xff]
  %v45 = vld [vmem:[%s0 + $0xe0] sm:$0xff]
  %v46 = vld [vmem:[%s0 + $0xe8] sm:$0xff]
  %v47 = vld [vmem:[%s0 + $0xf0] sm:$0xff]
  %v48 = vld [vmem:[%s0 + $0xf8] sm:$0xff]
  %v49 = vld [vmem:[%s1] sm:$0xff]
  %v50 = vld [vmem:[%s1 + $0x8] sm:$0xff]
  %v51 = vld [vmem:[%s1 + $0x10] sm:$0xff]
  %v52 = vld [vmem:[%s1 + $0x18] sm:$0xff]
  %v53 = vld [vmem:[%s1 + $0x20] sm:$0xff]
  %v54 = vld [vmem:[%s1 + $0x28] sm:$0xff]
  %v55 = vld [vmem:[%s1 + $0x30] sm:$0xff]
  %v56 = vld [vmem:[%s1 + $0x38] sm:$0xff]
  %v57 = vld [vmem:[%s1 + $0x40] sm:$0xff]
  %v58 = vld [vmem:[%s1 + $0x48] sm:$0xff]
  %v59 = vld [vmem:[%s1 + $0x50] sm:$0xff]
  %v60 = vld [vmem:[%s1 + $0x58] sm:$0xff]
  %v61 = vld [vmem:[%s1 + $0x60] sm:$0xff]
  %v62 = vld [vmem:[%s1 + $0x68] sm:$0xff]
  %v63 = vld [vmem:[%s1 + $0x70] sm:$0xff]
  %v64 = vld [vmem:[%s1 + $0x78] sm:$0xff]
  %v65 = vld [vmem:[%s1 + $0x80] sm:$0xff]
  %v66 = vld [vmem:[%s1 + $0x88] sm:$0xff]
  %v67 = vld [vmem:[%s2] sm:$0x1]
  %v69 = vlaneseq
  %v70 = vshrl.u32 %v69, 7
  %v71 = vsub.s32 0, %v70
  %v72 = vrot.slane %v67, %v71
  %vm74 = vcmask 130048
  %v76 = vsel %vm74, %v18, 0
  %v79 = vsel %vm74, %v20, 0
  %v82 = vsel %vm74, %v22, 0
  %v85 = vsel %vm74, %v24, 0
  %v88 = vsel %vm74, %v26, 0
  %v91 = vsel %vm74, %v28, 0
  %v94 = vsel %vm74, %v30, 0
  %v97 = vsel %vm74, %v32, 0
  %v100 = vsel %vm74, %v34, 0
  %v103 = vsel %vm74, %v36, 0
  %v106 = vsel %vm74, %v38, 0
  %v109 = vsel %vm74, %v40, 0
  %v112 = vsel %vm74, %v42, 0
  %v115 = vsel %vm74, %v44, 0
  %v118 = vsel %vm74, %v46, 0
  %v121 = vsel %vm74, %v48, 0
  %123 = vmatprep.subr.mxu0 0.0
  %124 = vmatpush1.msra.mxu0 %v49
  %125 = vmatprep.subr.mxu0 0.0
  %126 = vmatpush1.msra.mxu0 %v50
  %127 = vmatprep.subr.mxu0 0.0
  %128 = vmatpush1.msra.mxu0 %v51
  %129 = vmatprep.subr.mxu0 0.0
  %130 = vmatpush1.msra.mxu0 %v52
  %131 = vmatprep.subr.mxu0 0.0
  %132 = vmatpush1.msra.mxu0 %v53
  %133 = vmatprep.subr.mxu0 0.0
  %134 = vmatpush1.msra.mxu0 %v54
  %135 = vmatprep.subr.mxu0 0.0
  %136 = vmatpush1.msra.mxu0 %v55
  %137 = vmatprep.subr.mxu0 0.0
  %138 = vmatpush1.msra.mxu0 %v56
  %139 = vmatprep.subr.mxu0 0.0
  %140 = vmatpush1.msra.mxu0 %v57
  %141 = vmatprep.subr.mxu0 0.0
  %142 = vmatpush1.msra.mxu0 %v58
  %143 = vmatprep.subr.mxu0 0.0
  %144 = vmatpush1.msra.mxu0 %v59
  %145 = vmatprep.subr.mxu0 0.0
  %146 = vmatpush1.msra.mxu0 %v60
  %147 = vmatprep.subr.mxu0 0.0
  %148 = vmatpush1.msra.mxu0 %v61
  %149 = vmatprep.subr.mxu0 0.0
  %150 = vmatpush1.msra.mxu0 %v62
  %151 = vmatprep.subr.mxu0 0.0
  %152 = vmatpush1.msra.mxu0 %v63
  %153 = vmatprep.subr.mxu0 0.0
  %154 = vmatpush1.msra.mxu0 %v64
  %155 = vmatprep.subr.mxu0 0.0
  %156 = vmatpush1.msra.mxu0 %v65
  %157 = vmatprep.subr.mxu0 0.0
  %158 = vmatpush1.msra.mxu0 %v66
  %159 = vmatprep.subr.mxu0 0.0
  %160 = vmatpush1.msra.mxu0 0.0
  %161 = vmatprep.subr.mxu0 0.0
  %162 = vmatpush1.msra.mxu0 0.0
  %163 = vmatprep.subr.mxu0 0.0
  %164 = vmatpush1.msra.mxu0 0.0
  %165 = vmatprep.subr.mxu0 0.0
  %166 = vmatpush1.msra.mxu0 0.0
  %167 = vmatprep.subr.mxu0 0.0
  %168 = vmatpush1.msra.mxu0 0.0
  %169 = vmatprep.subr.mxu0 0.0
  %170 = vmatpush1.msra.mxu0 0.0
  %171 = vmatprep.subr.mxu0 0.0
  %172 = vmatpush1.msra.mxu0 0.0
  %173 = vmatprep.subr.mxu0 0.0
  %174 = vmatpush1.msra.mxu0 0.0
  %175 = vmatprep.subr.mxu0 0.0
  %176 = vmatpush1.msra.mxu0 0.0
  %177 = vmatprep.subr.mxu0 0.0
  %178 = vmatpush1.msra.mxu0 0.0
  %179 = vmatprep.subr.mxu0 0.0
  %180 = vmatpush1.msra.mxu0 0.0
  %181 = vmatprep.subr.mxu0 0.0
  %182 = vmatpush1.msra.mxu0 0.0
  %183 = vmatprep.subr.mxu0 0.0
  %184 = vmatpush1.msra.mxu0 0.0
  %185 = vmatprep.subr.mxu0 0.0
  %186 = vmatpush1.msra.mxu0 0.0
  %187 = vmatprep.mubr.f32.mxu0 %v76
  %188 = vmatmul.mubr.f32.gmra.mrb[0].mxu0 %v17
  %v189 = vpop.f32.mrb[0].mxu0
  %v190 = vadd.f32 %v72, %v189
  %v191 = vpop.f32.mrb[0].mxu0
  %192 = vmatprep.mubr.f32.mxu0 %v79
  %193 = vmatmul.mubr.f32.gmra.mrb[0].mxu0 %v19
  %v194 = vpop.f32.mrb[0].mxu0
  %v195 = vadd.f32 %v72, %v194
  %v196 = vpop.f32.mrb[0].mxu0
  %197 = vmatprep.mubr.f32.mxu0 %v82
  %198 = vmatmul.mubr.f32.gmra.mrb[0].mxu0 %v21
  %v199 = vpop.f32.mrb[0].mxu0
  %v200 = vadd.f32 %v72, %v199
  %v201 = vpop.f32.mrb[0].mxu0
  %202 = vmatprep.mubr.f32.mxu0 %v85
  %203 = vmatmul.mubr.f32.gmra.mrb[0].mxu0 %v23
  %v204 = vpop.f32.mrb[0].mxu0
  %v205 = vadd.f32 %v72, %v204
  %v206 = vpop.f32.mrb[0].mxu0
  %207 = vmatprep.mubr.f32.mxu0 %v88
  %208 = vmatmul.mubr.f32.gmra.mrb[0].mxu0 %v25
  %v209 = vpop.f32.mrb[0].mxu0
  %v210 = vadd.f32 %v72, %v209
  %v211 = vpop.f32.mrb[0].mxu0
  %212 = vmatprep.mubr.f32.mxu0 %v91
  %213 = vmatmul.mubr.f32.gmra.mrb[0].mxu0 %v27
  %v214 = vpop.f32.mrb[0].mxu0
  %v215 = vadd.f32 %v72, %v214
  %v216 = vpop.f32.mrb[0].mxu0
  %217 = vmatprep.mubr.f32.mxu0 %v94
  %218 = vmatmul.mubr.f32.gmra.mrb[0].mxu0 %v29
  %v219 = vpop.f32.mrb[0].mxu0
  %v220 = vadd.f32 %v72, %v219
  %v221 = vpop.f32.mrb[0].mxu0
  %222 = vmatprep.mubr.f32.mxu0 %v97
  %223 = vmatmul.mubr.f32.gmra.mrb[0].mxu0 %v31
  %v224 = vpop.f32.mrb[0].mxu0
  %v225 = vadd.f32 %v72, %v224
  %v226 = vpop.f32.mrb[0].mxu0
  %227 = vmatprep.mubr.f32.mxu0 %v100
  %228 = vmatmul.mubr.f32.gmra.mrb[0].mxu0 %v33
  %v229 = vpop.f32.mrb[0].mxu0
  %v230 = vadd.f32 %v72, %v229
  %v231 = vpop.f32.mrb[0].mxu0
  %232 = vmatprep.mubr.f32.mxu0 %v103
  %233 = vmatmul.mubr.f32.gmra.mrb[0].mxu0 %v35
  %v234 = vpop.f32.mrb[0].mxu0
  %v235 = vadd.f32 %v72, %v234
  %v236 = vpop.f32.mrb[0].mxu0
  %237 = vmatprep.mubr.f32.mxu0 %v106
  %238 = vmatmul.mubr.f32.gmra.mrb[0].mxu0 %v37
  %v239 = vpop.f32.mrb[0].mxu0
  %v240 = vadd.f32 %v72, %v239
  %v241 = vpop.f32.mrb[0].mxu0
  %242 = vmatprep.mubr.f32.mxu0 %v109
  %243 = vmatmul.mubr.f32.gmra.mrb[0].mxu0 %v39
  %v244 = vpop.f32.mrb[0].mxu0
  %v245 = vadd.f32 %v72, %v244
  %v246 = vpop.f32.mrb[0].mxu0
  %247 = vmatprep.mubr.f32.mxu0 %v112
  %248 = vmatmul.mubr.f32.gmra.mrb[0].mxu0 %v41
  %v249 = vpop.f32.mrb[0].mxu0
  %v250 = vadd.f32 %v72, %v249
  %v251 = vpop.f32.mrb[0].mxu0
  %252 = vmatprep.mubr.f32.mxu0 %v115
  %253 = vmatmul.mubr.f32.gmra.mrb[0].mxu0 %v43
  %v254 = vpop.f32.mrb[0].mxu0
  %v255 = vadd.f32 %v72, %v254
  %v256 = vpop.f32.mrb[0].mxu0
  %257 = vmatprep.mubr.f32.mxu0 %v118
  %258 = vmatmul.mubr.f32.gmra.mrb[0].mxu0 %v45
  %v259 = vpop.f32.mrb[0].mxu0
  %v260 = vadd.f32 %v72, %v259
  %v261 = vpop.f32.mrb[0].mxu0
  %262 = vmatprep.mubr.f32.mxu0 %v121
  %263 = vmatmul.mubr.f32.gmra.mrb[0].mxu0 %v47
  %v264 = vpop.f32.mrb[0].mxu0
  %v265 = vadd.f32 %v72, %v264
  %v266 = vpop.f32.mrb[0].mxu0
  %267 = vdwg.mxu0
  %v268 = vld [vmem:[%s3] sm:$0xff]
  %v269 = vld [vmem:[%s3 + $0x8] sm:$0xff]
  %v270 = vld [vmem:[%s3 + $0x10] sm:$0xff]
  %v271 = vld [vmem:[%s3 + $0x18] sm:$0xff]
  %v272 = vld [vmem:[%s3 + $0x20] sm:$0xff]
  %v273 = vld [vmem:[%s3 + $0x28] sm:$0xff]
  %v274 = vld [vmem:[%s3 + $0x30] sm:$0xff]
  %v275 = vld [vmem:[%s3 + $0x38] sm:$0xff]
  %v276 = vld [vmem:[%s3 + $0x40] sm:$0xff]
  %v277 = vld [vmem:[%s3 + $0x48] sm:$0xff]
  %v278 = vld [vmem:[%s3 + $0x50] sm:$0xff]
  %v279 = vld [vmem:[%s3 + $0x58] sm:$0xff]
  %v280 = vld [vmem:[%s3 + $0x60] sm:$0xff]
  %v281 = vld [vmem:[%s3 + $0x68] sm:$0xff]
  %v282 = vld [vmem:[%s3 + $0x70] sm:$0xff]
  %v283 = vld [vmem:[%s3 + $0x78] sm:$0xff]
  %v284 = vadd.f32 %v190, %v268
  %v285 = vadd.f32 %v195, %v269
  %v286 = vadd.f32 %v200, %v270
  %v287 = vadd.f32 %v205, %v271
  %v288 = vadd.f32 %v210, %v272
  %v289 = vadd.f32 %v215, %v273
  %v290 = vadd.f32 %v220, %v274
  %v291 = vadd.f32 %v225, %v275
  %v292 = vadd.f32 %v230, %v276
  %v293 = vadd.f32 %v235, %v277
  %v294 = vadd.f32 %v240, %v278
  %v295 = vadd.f32 %v245, %v279
  %v296 = vadd.f32 %v250, %v280
  %v297 = vadd.f32 %v255, %v281
  %v298 = vadd.f32 %v260, %v282
  %v299 = vadd.f32 %v265, %v283
  %300 = vst.msk [vmem:[%s4] sm:$0xff] %vm74, %v284
  %301 = vst.msk [vmem:[%s4 + $0x8] sm:$0xff] %vm74, %v285
  %302 = vst.msk [vmem:[%s4 + $0x10] sm:$0xff] %vm74, %v286
  %303 = vst.msk [vmem:[%s4 + $0x18] sm:$0xff] %vm74, %v287
  %304 = vst.msk [vmem:[%s4 + $0x20] sm:$0xff] %vm74, %v288
  %305 = vst.msk [vmem:[%s4 + $0x28] sm:$0xff] %vm74, %v289
  %306 = vst.msk [vmem:[%s4 + $0x30] sm:$0xff] %vm74, %v290
  %307 = vst.msk [vmem:[%s4 + $0x38] sm:$0xff] %vm74, %v291
  %308 = vst.msk [vmem:[%s4 + $0x40] sm:$0xff] %vm74, %v292
  %309 = vst.msk [vmem:[%s4 + $0x48] sm:$0xff] %vm74, %v293
  %310 = vst.msk [vmem:[%s4 + $0x50] sm:$0xff] %vm74, %v294
  %311 = vst.msk [vmem:[%s4 + $0x58] sm:$0xff] %vm74, %v295
  %312 = vst.msk [vmem:[%s4 + $0x60] sm:$0xff] %vm74, %v296
  %313 = vst.msk [vmem:[%s4 + $0x68] sm:$0xff] %vm74, %v297
  %314 = vst.msk [vmem:[%s4 + $0x70] sm:$0xff] %vm74, %v298
  %315 = vst.msk [vmem:[%s4 + $0x78] sm:$0xff] %vm74, %v299
  // Predicated region
  $region18: #{encoder_forward.8} parent=0 // pred_check
    _
  $region19: #{encoder_forward.8} parent=0 // pred_check_branch
    %317 = sbr.rel (0) target = $region21
  $region20: #{encoder_forward.8} parent=0 // pred_region
    _
  $region21: #{encoder_forward.8} parent=0 // pred_fallthru
    _
  // Predicated region
  $region22: #{encoder_forward.8} parent=0 // pred_check
    _
  $region23: #{encoder_forward.8} parent=0 // pred_check_branch
    %319 = sbr.rel (0) target = $region25
  $region24: #{encoder_forward.8} parent=0 // pred_region
    _
  $region25: #{encoder_forward.8} parent=0 // pred_fallthru
    _

// kernel: encoder_forward.7
$region0: #{encoder_forward.7}
  #allocation0 [shape = 'u32[]', space=smem, size = 0x4, offset = 0x4, fixed_abs, tag = 'smem constant byte address 0x4 - core index']
  #allocation1 [shape = 'u32[144,128]{1,0:T(1,128)}', space=vmem, size = 0x12000, scoped, tag = 'internal scratch']
  %s0 = inlined_call_operand.vmem [shape: f32[128,144], index: 0, kind: input, shape index: {}]
  %s1 = inlined_call_operand.vmem [shape: f32[144,16], index: 1, kind: input, shape index: {}]
  %s2 = inlined_call_operand.vmem [shape: f32[1,16], index: 2, kind: input, shape index: {}]
  %s3 = inlined_call_operand.vmem [shape: f32[1,16], index: 3, kind: input, shape index: {}]
  %s4 = inlined_call_operand.vmem [shape: f32[1,16], index: 4, kind: input, shape index: {}]
  %s5 = inlined_call_operand.vmem [shape: f32[128,16], index: 5, kind: output, shape index: {}]
  %s6 = sld [smem:[#allocation0]]
  $region30: #{encoder_forward.7} parent=0
    _
  %s8 = ssub.s32 1, %s6
  %s9 = scalar_select 0, %s8, %s6
  // Predicated region
  $region2: #{encoder_forward.7} parent=0 // pred_check
    _
  $region3: #{encoder_forward.7} parent=0 // pred_check_branch
    %11 = sbr.rel (0) target = $region5
  $region4: #{encoder_forward.7} parent=0 // pred_region
    _
  $region5: #{encoder_forward.7} parent=0 // pred_fallthru
    _
  // Predicated region
  $region6: #{encoder_forward.7} parent=0 // pred_check
    _
  $region7: #{encoder_forward.7} parent=0 // pred_check_branch
    %13 = sbr.rel (0) target = $region9
  $region8: #{encoder_forward.7} parent=0 // pred_region
    _
  $region9: #{encoder_forward.7} parent=0 // pred_fallthru
    _
  // Predicated region
  $region10: #{encoder_forward.7} parent=0 // pred_check
    _
  $region11: #{encoder_forward.7} parent=0 // pred_check_branch
    %15 = sbr.rel (0) target = $region13
  $region12: #{encoder_forward.7} parent=0 // pred_region
    _
  $region13: #{encoder_forward.7} parent=0 // pred_fallthru
    _
  // Predicated region
  $region14: #{encoder_forward.7} parent=0 // pred_check
    _
  $region15: #{encoder_forward.7} parent=0 // pred_check_branch
    %17 = sbr.rel (0) target = $region17
  $region16: #{encoder_forward.7} parent=0 // pred_region
    _
  $region17: #{encoder_forward.7} parent=0 // pred_fallthru
    _
  // Predicated region
  $region18: #{encoder_forward.7} parent=0 // pred_check
    _
  $region19: #{encoder_forward.7} parent=0 // pred_check_branch
    %19 = sbr.rel (0) target = $region21
  $region20: #{encoder_forward.7} parent=0 // pred_region
    _
  $region21: #{encoder_forward.7} parent=0 // pred_fallthru
    _
  %v20 = vld [vmem:[%s0] sm:$0xff]
  %v21 = vld [vmem:[%s0 + $0x8] sm:$0xff]
  %v22 = vld [vmem:[%s0 + $0x10] sm:$0xff]
  %v23 = vld [vmem:[%s0 + $0x18] sm:$0xff]
  %v24 = vld [vmem:[%s0 + $0x20] sm:$0xff]
  %v25 = vld [vmem:[%s0 + $0x28] sm:$0xff]
  %v26 = vld [vmem:[%s0 + $0x30] sm:$0xff]
  %v27 = vld [vmem:[%s0 + $0x38] sm:$0xff]
  %v28 = vld [vmem:[%s0 + $0x40] sm:$0xff]
  %v29 = vld [vmem:[%s0 + $0x48] sm:$0xff]
  %v30 = vld [vmem:[%s0 + $0x50] sm:$0xff]
  %v31 = vld [vmem:[%s0 + $0x58] sm:$0xff]
  %v32 = vld [vmem:[%s0 + $0x60] sm:$0xff]
  %v33 = vld [vmem:[%s0 + $0x68] sm:$0xff]
  %v34 = vld [vmem:[%s0 + $0x70] sm:$0xff]
  %v35 = vld [vmem:[%s0 + $0x78] sm:$0xff]
  %v36 = vld [vmem:[%s0 + $0x80] sm:$0xff]
  %v37 = vld [vmem:[%s0 + $0x88] sm:$0xff]
  %v38 = vld [vmem:[%s0 + $0x90] sm:$0xff]
  %v39 = vld [vmem:[%s0 + $0x98] sm:$0xff]
  %v40 = vld [vmem:[%s0 + $0xa0] sm:$0xff]
  %v41 = vld [vmem:[%s0 + $0xa8] sm:$0xff]
  %v42 = vld [vmem:[%s0 + $0xb0] sm:$0xff]
  %v43 = vld [vmem:[%s0 + $0xb8] sm:$0xff]
  %v44 = vld [vmem:[%s0 + $0xc0] sm:$0xff]
  %v45 = vld [vmem:[%s0 + $0xc8] sm:$0xff]
  %v46 = vld [vmem:[%s0 + $0xd0] sm:$0xff]
  %v47 = vld [vmem:[%s0 + $0xd8] sm:$0xff]
  %v48 = vld [vmem:[%s0 + $0xe0] sm:$0xff]
  %v49 = vld [vmem:[%s0 + $0xe8] sm:$0xff]
  %v50 = vld [vmem:[%s0 + $0xf0] sm:$0xff]
  %v51 = vld [vmem:[%s0 + $0xf8] sm:$0xff]
  %v52 = vld [vmem:[%s1] sm:$0xff]
  %v53 = vld [vmem:[%s1 + $0x8] sm:$0xff]
  %v54 = vld [vmem:[%s1 + $0x10] sm:$0xff]
  %v55 = vld [vmem:[%s1 + $0x18] sm:$0xff]
  %v56 = vld [vmem:[%s1 + $0x20] sm:$0xff]
  %v57 = vld [vmem:[%s1 + $0x28] sm:$0xff]
  %v58 = vld [vmem:[%s1 + $0x30] sm:$0xff]
  %v59 = vld [vmem:[%s1 + $0x38] sm:$0xff]
  %v60 = vld [vmem:[%s1 + $0x40] sm:$0xff]
  %v61 = vld [vmem:[%s1 + $0x48] sm:$0xff]
  %v62 = vld [vmem:[%s1 + $0x50] sm:$0xff]
  %v63 = vld [vmem:[%s1 + $0x58] sm:$0xff]
  %v64 = vld [vmem:[%s1 + $0x60] sm:$0xff]
  %v65 = vld [vmem:[%s1 + $0x68] sm:$0xff]
  %v66 = vld [vmem:[%s1 + $0x70] sm:$0xff]
  %v67 = vld [vmem:[%s1 + $0x78] sm:$0xff]
  %v68 = vld [vmem:[%s1 + $0x80] sm:$0xff]
  %v69 = vld [vmem:[%s1 + $0x88] sm:$0xff]
  %v70 = vld [vmem:[%s2] sm:$0x1]
  %v72 = vlaneseq
  %v73 = vshrl.u32 %v72, 7
  %v74 = vsub.s32 0, %v73
  %v75 = vrot.slane %v70, %v74
  %vm77 = vcmask 130048
  %v79 = vsel %vm77, %v21, 0
  %v82 = vsel %vm77, %v23, 0
  %v85 = vsel %vm77, %v25, 0
  %v88 = vsel %vm77, %v27, 0
  %v91 = vsel %vm77, %v29, 0
  %v94 = vsel %vm77, %v31, 0
  %v97 = vsel %vm77, %v33, 0
  %v100 = vsel %vm77, %v35, 0
  %v103 = vsel %vm77, %v37, 0
  %v106 = vsel %vm77, %v39, 0
  %v109 = vsel %vm77, %v41, 0
  %v112 = vsel %vm77, %v43, 0
  %v115 = vsel %vm77, %v45, 0
  %v118 = vsel %vm77, %v47, 0
  %v121 = vsel %vm77, %v49, 0
  %v124 = vsel %vm77, %v51, 0
  %126 = vmatprep.subr.mxu0 0.0
  %127 = vmatpush1.msra.mxu0 %v52
  %128 = vmatprep.subr.mxu0 0.0
  %129 = vmatpush1.msra.mxu0 %v53
  %130 = vmatprep.subr.mxu0 0.0
  %131 = vmatpush1.msra.mxu0 %v54
  %132 = vmatprep.subr.mxu0 0.0
  %133 = vmatpush1.msra.mxu0 %v55
  %134 = vmatprep.subr.mxu0 0.0
  %135 = vmatpush1.msra.mxu0 %v56
  %136 = vmatprep.subr.mxu0 0.0
  %137 = vmatpush1.msra.mxu0 %v57
  %138 = vmatprep.subr.mxu0 0.0
  %139 = vmatpush1.msra.mxu0 %v58
  %140 = vmatprep.subr.mxu0 0.0
  %141 = vmatpush1.msra.mxu0 %v59
  %142 = vmatprep.subr.mxu0 0.0
  %143 = vmatpush1.msra.mxu0 %v60
  %144 = vmatprep.subr.mxu0 0.0
  %145 = vmatpush1.msra.mxu0 %v61
  %146 = vmatprep.subr.mxu0 0.0
  %147 = vmatpush1.msra.mxu0 %v62
  %148 = vmatprep.subr.mxu0 0.0
  %149 = vmatpush1.msra.mxu0 %v63
  %150 = vmatprep.subr.mxu0 0.0
  %151 = vmatpush1.msra.mxu0 %v64
  %152 = vmatprep.subr.mxu0 0.0
  %153 = vmatpush1.msra.mxu0 %v65
  %154 = vmatprep.subr.mxu0 0.0
  %155 = vmatpush1.msra.mxu0 %v66
  %156 = vmatprep.subr.mxu0 0.0
  %157 = vmatpush1.msra.mxu0 %v67
  %158 = vmatprep.subr.mxu0 0.0
  %159 = vmatpush1.msra.mxu0 %v68
  %160 = vmatprep.subr.mxu0 0.0
  %161 = vmatpush1.msra.mxu0 %v69
  %162 = vmatprep.subr.mxu0 0.0
  %163 = vmatpush1.msra.mxu0 0.0
  %164 = vmatprep.subr.mxu0 0.0
  %165 = vmatpush1.msra.mxu0 0.0
  %166 = vmatprep.subr.mxu0 0.0
  %167 = vmatpush1.msra.mxu0 0.0
  %168 = vmatprep.subr.mxu0 0.0
  %169 = vmatpush1.msra.mxu0 0.0
  %170 = vmatprep.subr.mxu0 0.0
  %171 = vmatpush1.msra.mxu0 0.0
  %172 = vmatprep.subr.mxu0 0.0
  %173 = vmatpush1.msra.mxu0 0.0
  %174 = vmatprep.subr.mxu0 0.0
  %175 = vmatpush1.msra.mxu0 0.0
  %176 = vmatprep.subr.mxu0 0.0
  %177 = vmatpush1.msra.mxu0 0.0
  %178 = vmatprep.subr.mxu0 0.0
  %179 = vmatpush1.msra.mxu0 0.0
  %180 = vmatprep.subr.mxu0 0.0
  %181 = vmatpush1.msra.mxu0 0.0
  %182 = vmatprep.subr.mxu0 0.0
  %183 = vmatpush1.msra.mxu0 0.0
  %184 = vmatprep.subr.mxu0 0.0
  %185 = vmatpush1.msra.mxu0 0.0
  %186 = vmatprep.subr.mxu0 0.0
  %187 = vmatpush1.msra.mxu0 0.0
  %188 = vmatprep.subr.mxu0 0.0
  %189 = vmatpush1.msra.mxu0 0.0
  %190 = vmatprep.mubr.f32.mxu0 %v79
  %191 = vmatmul.mubr.f32.gmra.mrb[0].mxu0 %v20
  %v192 = vpop.f32.mrb[0].mxu0
  %v193 = vadd.f32 %v75, %v192
  %v194 = vpop.f32.mrb[0].mxu0
  %195 = vmatprep.mubr.f32.mxu0 %v82
  %196 = vmatmul.mubr.f32.gmra.mrb[0].mxu0 %v22
  %v197 = vpop.f32.mrb[0].mxu0
  %v198 = vadd.f32 %v75, %v197
  %v199 = vpop.f32.mrb[0].mxu0
  %200 = vmatprep.mubr.f32.mxu0 %v85
  %201 = vmatmul.mubr.f32.gmra.mrb[0].mxu0 %v24
  %v202 = vpop.f32.mrb[0].mxu0
  %v203 = vadd.f32 %v75, %v202
  %v204 = vpop.f32.mrb[0].mxu0
  %205 = vmatprep.mubr.f32.mxu0 %v88
  %206 = vmatmul.mubr.f32.gmra.mrb[0].mxu0 %v26
  %v207 = vpop.f32.mrb[0].mxu0
  %v208 = vadd.f32 %v75, %v207
  %v209 = vpop.f32.mrb[0].mxu0
  %210 = vmatprep.mubr.f32.mxu0 %v91
  %211 = vmatmul.mubr.f32.gmra.mrb[0].mxu0 %v28
  %v212 = vpop.f32.mrb[0].mxu0
  %v213 = vadd.f32 %v75, %v212
  %v214 = vpop.f32.mrb[0].mxu0
  %215 = vmatprep.mubr.f32.mxu0 %v94
  %216 = vmatmul.mubr.f32.gmra.mrb[0].mxu0 %v30
  %v217 = vpop.f32.mrb[0].mxu0
  %v218 = vadd.f32 %v75, %v217
  %v219 = vpop.f32.mrb[0].mxu0
  %220 = vmatprep.mubr.f32.mxu0 %v97
  %221 = vmatmul.mubr.f32.gmra.mrb[0].mxu0 %v32
  %v222 = vpop.f32.mrb[0].mxu0
  %v223 = vadd.f32 %v75, %v222
  %v224 = vpop.f32.mrb[0].mxu0
  %225 = vmatprep.mubr.f32.mxu0 %v100
  %226 = vmatmul.mubr.f32.gmra.mrb[0].mxu0 %v34
  %v227 = vpop.f32.mrb[0].mxu0
  %v228 = vadd.f32 %v75, %v227
  %v229 = vpop.f32.mrb[0].mxu0
  %230 = vmatprep.mubr.f32.mxu0 %v103
  %231 = vmatmul.mubr.f32.gmra.mrb[0].mxu0 %v36
  %v232 = vpop.f32.mrb[0].mxu0
  %v233 = vadd.f32 %v75, %v232
  %v234 = vpop.f32.mrb[0].mxu0
  %235 = vmatprep.mubr.f32.mxu0 %v106
  %236 = vmatmul.mubr.f32.gmra.mrb[0].mxu0 %v38
  %v237 = vpop.f32.mrb[0].mxu0
  %v238 = vadd.f32 %v75, %v237
  %v239 = vpop.f32.mrb[0].mxu0
  %240 = vmatprep.mubr.f32.mxu0 %v109
  %241 = vmatmul.mubr.f32.gmra.mrb[0].mxu0 %v40
  %v242 = vpop.f32.mrb[0].mxu0
  %v243 = vadd.f32 %v75, %v242
  %v244 = vpop.f32.mrb[0].mxu0
  %245 = vmatprep.mubr.f32.mxu0 %v112
  %246 = vmatmul.mubr.f32.gmra.mrb[0].mxu0 %v42
  %v247 = vpop.f32.mrb[0].mxu0
  %v248 = vadd.f32 %v75, %v247
  %v249 = vpop.f32.mrb[0].mxu0
  %250 = vmatprep.mubr.f32.mxu0 %v115
  %251 = vmatmul.mubr.f32.gmra.mrb[0].mxu0 %v44
  %v252 = vpop.f32.mrb[0].mxu0
  %v253 = vadd.f32 %v75, %v252
  %v254 = vpop.f32.mrb[0].mxu0
  %255 = vmatprep.mubr.f32.mxu0 %v118
  %256 = vmatmul.mubr.f32.gmra.mrb[0].mxu0 %v46
  %v257 = vpop.f32.mrb[0].mxu0
  %v258 = vadd.f32 %v75, %v257
  %v259 = vpop.f32.mrb[0].mxu0
  %260 = vmatprep.mubr.f32.mxu0 %v121
  %261 = vmatmul.mubr.f32.gmra.mrb[0].mxu0 %v48
  %v262 = vpop.f32.mrb[0].mxu0
  %v263 = vadd.f32 %v75, %v262
  %v264 = vpop.f32.mrb[0].mxu0
  %265 = vmatprep.mubr.f32.mxu0 %v124
  %266 = vmatmul.mubr.f32.gmra.mrb[0].mxu0 %v50
  %v267 = vpop.f32.mrb[0].mxu0
  %v268 = vadd.f32 %v75, %v267
  %v269 = vpop.f32.mrb[0].mxu0
  %270 = vdwg.mxu0
  %v271 = vld [vmem:[%s3] sm:$0x1]
  %v273 = vlaneseq
  %v274 = vshrl.u32 %v273, 7
  %v275 = vsub.s32 0, %v274
  %v276 = vrot.slane %v271, %v275
  %v278 = vmul.f32 %v193, %v276
  %v279 = vmul.f32 %v198, %v276
  %v280 = vmul.f32 %v203, %v276
  %v281 = vmul.f32 %v208, %v276
  %v282 = vmul.f32 %v213, %v276
  %v283 = vmul.f32 %v218, %v276
  %v284 = vmul.f32 %v223, %v276
  %v285 = vmul.f32 %v228, %v276
  %v286 = vmul.f32 %v233, %v276
  %v287 = vmul.f32 %v238, %v276
  %v288 = vmul.f32 %v243, %v276
  %v289 = vmul.f32 %v248, %v276
  %v290 = vmul.f32 %v253, %v276
  %v291 = vmul.f32 %v258, %v276
  %v292 = vmul.f32 %v263, %v276
  %v293 = vmul.f32 %v268, %v276
  %v294 = vld [vmem:[%s4] sm:$0x1]
  %v296 = vlaneseq
  %v297 = vshrl.u32 %v296, 7
  %v298 = vsub.s32 0, %v297
  %v299 = vrot.slane %v294, %v298
  %v301 = vadd.f32 %v278, %v299
  %v302 = vadd.f32 %v279, %v299
  %v303 = vadd.f32 %v280, %v299
  %v304 = vadd.f32 %v281, %v299
  %v305 = vadd.f32 %v282, %v299
  %v306 = vadd.f32 %v283, %v299
  %v307 = vadd.f32 %v284, %v299
  %v308 = vadd.f32 %v285, %v299
  %v309 = vadd.f32 %v286, %v299
  %v310 = vadd.f32 %v287, %v299
  %v311 = vadd.f32 %v288, %v299
  %v312 = vadd.f32 %v289, %v299
  %v313 = vadd.f32 %v290, %v299
  %v314 = vadd.f32 %v291, %v299
  %v315 = vadd.f32 %v292, %v299
  %v316 = vadd.f32 %v293, %v299
  %vm317 = vcmp.ge.f32.partialorder %v301, 0.0
  %vm318 = vcmp.ge.f32.partialorder %v302, 0.0
  %vm319 = vcmp.ge.f32.partialorder %v303, 0.0
  %vm320 = vcmp.ge.f32.partialorder %v304, 0.0
  %vm321 = vcmp.ge.f32.partialorder %v305, 0.0
  %vm322 = vcmp.ge.f32.partialorder %v306, 0.0
  %vm323 = vcmp.ge.f32.partialorder %v307, 0.0
  %vm324 = vcmp.ge.f32.partialorder %v308, 0.0
  %vm325 = vcmp.ge.f32.partialorder %v309, 0.0
  %vm326 = vcmp.ge.f32.partialorder %v310, 0.0
  %vm327 = vcmp.ge.f32.partialorder %v311, 0.0
  %vm328 = vcmp.ge.f32.partialorder %v312, 0.0
  %vm329 = vcmp.ge.f32.partialorder %v313, 0.0
  %vm330 = vcmp.ge.f32.partialorder %v314, 0.0
  %vm331 = vcmp.ge.f32.partialorder %v315, 0.0
  %vm332 = vcmp.ge.f32.partialorder %v316, 0.0
  %v333 = vmul.f32 %v301, 0.01
  %v334 = vmul.f32 %v302, 0.01
  %v335 = vmul.f32 %v303, 0.01
  %v336 = vmul.f32 %v304, 0.01
  %v337 = vmul.f32 %v305, 0.01
  %v338 = vmul.f32 %v306, 0.01
  %v339 = vmul.f32 %v307, 0.01
  %v340 = vmul.f32 %v308, 0.01
  %v341 = vmul.f32 %v309, 0.01
  %v342 = vmul.f32 %v310, 0.01
  %v343 = vmul.f32 %v311, 0.01
  %v344 = vmul.f32 %v312, 0.01
  %v345 = vmul.f32 %v313, 0.01
  %v346 = vmul.f32 %v314, 0.01
  %v347 = vmul.f32 %v315, 0.01
  %v348 = vmul.f32 %v316, 0.01
  %v349 = vsel %vm317, %v301, %v333
  %v350 = vsel %vm318, %v302, %v334
  %v351 = vsel %vm319, %v303, %v335
  %v352 = vsel %vm320, %v304, %v336
  %v353 = vsel %vm321, %v305, %v337
  %v354 = vsel %vm322, %v306, %v338
  %v355 = vsel %vm323, %v307, %v339
  %v356 = vsel %vm324, %v308, %v340
  %v357 = vsel %vm325, %v309, %v341
  %v358 = vsel %vm326, %v310, %v342
  %v359 = vsel %vm327, %v311, %v343
  %v360 = vsel %vm328, %v312, %v344
  %v361 = vsel %vm329, %v313, %v345
  %v362 = vsel %vm330, %v314, %v346
  %v363 = vsel %vm331, %v315, %v347
  %v364 = vsel %vm332, %v316, %v348
  %365 = vst.msk [vmem:[%s5] sm:$0xff] %vm77, %v349
  %366 = vst.msk [vmem:[%s5 + $0x8] sm:$0xff] %vm77, %v350
  %367 = vst.msk [vmem:[%s5 + $0x10] sm:$0xff] %vm77, %v351
  %368 = vst.msk [vmem:[%s5 + $0x18] sm:$0xff] %vm77, %v352
  %369 = vst.msk [vmem:[%s5 + $0x20] sm:$0xff] %vm77, %v353
  %370 = vst.msk [vmem:[%s5 + $0x28] sm:$0xff] %vm77, %v354
  %371 = vst.msk [vmem:[%s5 + $0x30] sm:$0xff] %vm77, %v355
  %372 = vst.msk [vmem:[%s5 + $0x38] sm:$0xff] %vm77, %v356
  %373 = vst.msk [vmem:[%s5 + $0x40] sm:$0xff] %vm77, %v357
  %374 = vst.msk [vmem:[%s5 + $0x48] sm:$0xff] %vm77, %v358
  %375 = vst.msk [vmem:[%s5 + $0x50] sm:$0xff] %vm77, %v359
  %376 = vst.msk [vmem:[%s5 + $0x58] sm:$0xff] %vm77, %v360
  %377 = vst.msk [vmem:[%s5 + $0x60] sm:$0xff] %vm77, %v361
  %378 = vst.msk [vmem:[%s5 + $0x68] sm:$0xff] %vm77, %v362
  %379 = vst.msk [vmem:[%s5 + $0x70] sm:$0xff] %vm77, %v363
  %380 = vst.msk [vmem:[%s5 + $0x78] sm:$0xff] %vm77, %v364
  // Predicated region
  $region22: #{encoder_forward.7} parent=0 // pred_check
    _
  $region23: #{encoder_forward.7} parent=0 // pred_check_branch
    %382 = sbr.rel (0) target = $region25
  $region24: #{encoder_forward.7} parent=0 // pred_region
    _
  $region25: #{encoder_forward.7} parent=0 // pred_fallthru
    _
  // Predicated region
  $region26: #{encoder_forward.7} parent=0 // pred_check
    _
  $region27: #{encoder_forward.7} parent=0 // pred_check_branch
    %384 = sbr.rel (0) target = $region29
  $region28: #{encoder_forward.7} parent=0 // pred_region
    _
  $region29: #{encoder_forward.7} parent=0 // pred_fallthru
    _

// kernel: encoder_forward.9
$region0: #{encoder_forward.9}
  #allocation0 [shape = 'u32[]', space=smem, size = 0x4, offset = 0x4, fixed_abs, tag = 'smem constant byte address 0x4 - core index']
  #allocation1 [shape = 'u32[144,128]{1,0:T(1,128)}', space=vmem, size = 0x12000, scoped, tag = 'internal scratch']
  %s0 = inlined_call_operand.vmem [shape: f32[32,144], index: 0, kind: input, shape index: {}]
  %s1 = inlined_call_operand.vmem [shape: f32[144,32], index: 1, kind: input, shape index: {}]
  %s2 = inlined_call_operand.vmem [shape: f32[1,32], index: 2, kind: input, shape index: {}]
  %s3 = inlined_call_operand.vmem [shape: f32[1,32], index: 3, kind: input, shape index: {}]
  %s4 = inlined_call_operand.vmem [shape: f32[1,32], index: 4, kind: input, shape index: {}]
  %s5 = inlined_call_operand.vmem [shape: f32[1,32], index: 5, kind: input, shape index: {}]
  %s6 = inlined_call_operand.vmem [shape: f32[1,32], index: 6, kind: input, shape index: {}]
  %s7 = inlined_call_operand.vmem [shape: f32[32,32], index: 7, kind: output, shape index: {0}]
  %s8 = inlined_call_operand.vmem [shape: f32[32,32], index: 8, kind: output, shape index: {1}]
  %9 = xla_tuple %s7, %s8
  %s10 = sld [smem:[#allocation0]]
  $region46: #{encoder_forward.9} parent=0
    _
  %s12 = ssub.s32 1, %s10
  %s13 = scalar_select 0, %s12, %s10
  // Predicated region
  $region2: #{encoder_forward.9} parent=0 // pred_check
    _
  $region3: #{encoder_forward.9} parent=0 // pred_check_branch
    %15 = sbr.rel (0) target = $region5
  $region4: #{encoder_forward.9} parent=0 // pred_region
    _
  $region5: #{encoder_forward.9} parent=0 // pred_fallthru
    _
  // Predicated region
  $region6: #{encoder_forward.9} parent=0 // pred_check
    _
  $region7: #{encoder_forward.9} parent=0 // pred_check_branch
    %17 = sbr.rel (0) target = $region9
  $region8: #{encoder_forward.9} parent=0 // pred_region
    _
  $region9: #{encoder_forward.9} parent=0 // pred_fallthru
    _
  // Predicated region
  $region10: #{encoder_forward.9} parent=0 // pred_check
    _
  $region11: #{encoder_forward.9} parent=0 // pred_check_branch
    %19 = sbr.rel (0) target = $region13
  $region12: #{encoder_forward.9} parent=0 // pred_region
    _
  $region13: #{encoder_forward.9} parent=0 // pred_fallthru
    _
  // Predicated region
  $region14: #{encoder_forward.9} parent=0 // pred_check
    _
  $region15: #{encoder_forward.9} parent=0 // pred_check_branch
    %21 = sbr.rel (0) target = $region17
  $region16: #{encoder_forward.9} parent=0 // pred_region
    _
  $region17: #{encoder_forward.9} parent=0 // pred_fallthru
    _
  // Predicated region
  $region18: #{encoder_forward.9} parent=0 // pred_check
    _
  $region19: #{encoder_forward.9} parent=0 // pred_check_branch
    %23 = sbr.rel (0) target = $region21
  $region20: #{encoder_forward.9} parent=0 // pred_region
    _
  $region21: #{encoder_forward.9} parent=0 // pred_fallthru
    _
  // Predicated region
  $region22: #{encoder_forward.9} parent=0 // pred_check
    _
  $region23: #{encoder_forward.9} parent=0 // pred_check_branch
    %25 = sbr.rel (0) target = $region25
  $region24: #{encoder_forward.9} parent=0 // pred_region
    _
  $region25: #{encoder_forward.9} parent=0 // pred_fallthru
    _
  // Predicated region
  $region26: #{encoder_forward.9} parent=0 // pred_check
    _
  $region27: #{encoder_forward.9} parent=0 // pred_check_branch
    %27 = sbr.rel (0) target = $region29
  $region28: #{encoder_forward.9} parent=0 // pred_region
    _
  $region29: #{encoder_forward.9} parent=0 // pred_fallthru
    _
  %v28 = vld [vmem:[%s0] sm:$0xff]
  %v29 = vld [vmem:[%s0 + $0x8] sm:$0xff]
  %v30 = vld [vmem:[%s0 + $0x10] sm:$0xff]
  %v31 = vld [vmem:[%s0 + $0x18] sm:$0xff]
  %v32 = vld [vmem:[%s0 + $0x20] sm:$0xff]
  %v33 = vld [vmem:[%s0 + $0x28] sm:$0xff]
  %v34 = vld [vmem:[%s0 + $0x30] sm:$0xff]
  %v35 = vld [vmem:[%s0 + $0x38] sm:$0xff]
  %v36 = vld [vmem:[%s1] sm:$0xff]
  %v37 = vld [vmem:[%s1 + $0x8] sm:$0xff]
  %v38 = vld [vmem:[%s1 + $0x10] sm:$0xff]
  %v39 = vld [vmem:[%s1 + $0x18] sm:$0xff]
  %v40 = vld [vmem:[%s1 + $0x20] sm:$0xff]
  %v41 = vld [vmem:[%s1 + $0x28] sm:$0xff]
  %v42 = vld [vmem:[%s1 + $0x30] sm:$0xff]
  %v43 = vld [vmem:[%s1 + $0x38] sm:$0xff]
  %v44 = vld [vmem:[%s1 + $0x40] sm:$0xff]
  %v45 = vld [vmem:[%s1 + $0x48] sm:$0xff]
  %v46 = vld [vmem:[%s1 + $0x50] sm:$0xff]
  %v47 = vld [vmem:[%s1 + $0x58] sm:$0xff]
  %v48 = vld [vmem:[%s1 + $0x60] sm:$0xff]
  %v49 = vld [vmem:[%s1 + $0x68] sm:$0xff]
  %v50 = vld [vmem:[%s1 + $0x70] sm:$0xff]
  %v51 = vld [vmem:[%s1 + $0x78] sm:$0xff]
  %v52 = vld [vmem:[%s1 + $0x80] sm:$0xff]
  %v53 = vld [vmem:[%s1 + $0x88] sm:$0xff]
  %v54 = vld [vmem:[%s2] sm:$0x1]
  %v56 = vlaneseq
  %v57 = vshrl.u32 %v56, 7
  %v58 = vsub.s32 0, %v57
  %v59 = vrot.slane %v54, %v58
  %vm61 = vcmask 130048
  %v63 = vsel %vm61, %v29, 0
  %v66 = vsel %vm61, %v31, 0
  %v69 = vsel %vm61, %v33, 0
  %v72 = vsel %vm61, %v35, 0
  %74 = vmatprep.subr.mxu0 0.0
  %75 = vmatpush1.msra.mxu0 %v36
  %76 = vmatprep.subr.mxu0 0.0
  %77 = vmatpush1.msra.mxu0 %v37
  %78 = vmatprep.subr.mxu0 0.0
  %79 = vmatpush1.msra.mxu0 %v38
  %80 = vmatprep.subr.mxu0 0.0
  %81 = vmatpush1.msra.mxu0 %v39
  %82 = vmatprep.subr.mxu0 0.0
  %83 = vmatpush1.msra.mxu0 %v40
  %84 = vmatprep.subr.mxu0 0.0
  %85 = vmatpush1.msra.mxu0 %v41
  %86 = vmatprep.subr.mxu0 0.0
  %87 = vmatpush1.msra.mxu0 %v42
  %88 = vmatprep.subr.mxu0 0.0
  %89 = vmatpush1.msra.mxu0 %v43
  %90 = vmatprep.subr.mxu0 0.0
  %91 = vmatpush1.msra.mxu0 %v44
  %92 = vmatprep.subr.mxu0 0.0
  %93 = vmatpush1.msra.mxu0 %v45
  %94 = vmatprep.subr.mxu0 0.0
  %95 = vmatpush1.msra.mxu0 %v46
  %96 = vmatprep.subr.mxu0 0.0
  %97 = vmatpush1.msra.mxu0 %v47
  %98 = vmatprep.subr.mxu0 0.0
  %99 = vmatpush1.msra.mxu0 %v48
  %100 = vmatprep.subr.mxu0 0.0
  %101 = vmatpush1.msra.mxu0 %v49
  %102 = vmatprep.subr.mxu0 0.0
  %103 = vmatpush1.msra.mxu0 %v50
  %104 = vmatprep.subr.mxu0 0.0
  %105 = vmatpush1.msra.mxu0 %v51
  %106 = vmatprep.subr.mxu0 0.0
  %107 = vmatpush1.msra.mxu0 %v52
  %108 = vmatprep.subr.mxu0 0.0
  %109 = vmatpush1.msra.mxu0 %v53
  %110 = vmatprep.subr.mxu0 0.0
  %111 = vmatpush1.msra.mxu0 0.0
  %112 = vmatprep.subr.mxu0 0.0
  %113 = vmatpush1.msra.mxu0 0.0
  %114 = vmatprep.subr.mxu0 0.0
  %115 = vmatpush1.msra.mxu0 0.0
  %116 = vmatprep.subr.mxu0 0.0
  %117 = vmatpush1.msra.mxu0 0.0
  %118 = vmatprep.subr.mxu0 0.0
  %119 = vmatpush1.msra.mxu0 0.0
  %120 = vmatprep.subr.mxu0 0.0
  %121 = vmatpush1.msra.mxu0 0.0
  %122 = vmatprep.subr.mxu0 0.0
  %123 = vmatpush1.msra.mxu0 0.0
  %124 = vmatprep.subr.mxu0 0.0
  %125 = vmatpush1.msra.mxu0 0.0
  %126 = vmatprep.subr.mxu0 0.0
  %127 = vmatpush1.msra.mxu0 0.0
  %128 = vmatprep.subr.mxu0 0.0
  %129 = vmatpush1.msra.mxu0 0.0
  %130 = vmatprep.subr.mxu0 0.0
  %131 = vmatpush1.msra.mxu0 0.0
  %132 = vmatprep.subr.mxu0 0.0
  %133 = vmatpush1.msra.mxu0 0.0
  %134 = vmatprep.subr.mxu0 0.0
  %135 = vmatpush1.msra.mxu0 0.0
  %136 = vmatprep.subr.mxu0 0.0
  %137 = vmatpush1.msra.mxu0 0.0
  %138 = vmatprep.mubr.f32.mxu0 %v63
  %139 = vmatmul.mubr.f32.gmra.mrb[0].mxu0 %v28
  %v140 = vpop.f32.mrb[0].mxu0
  %v141 = vadd.f32 %v59, %v140
  %v142 = vpop.f32.mrb[0].mxu0
  %143 = vmatprep.mubr.f32.mxu0 %v66
  %144 = vmatmul.mubr.f32.gmra.mrb[0].mxu0 %v30
  %v145 = vpop.f32.mrb[0].mxu0
  %v146 = vadd.f32 %v59, %v145
  %v147 = vpop.f32.mrb[0].mxu0
  %148 = vmatprep.mubr.f32.mxu0 %v69
  %149 = vmatmul.mubr.f32.gmra.mrb[0].mxu0 %v32
  %v150 = vpop.f32.mrb[0].mxu0
  %v151 = vadd.f32 %v59, %v150
  %v152 = vpop.f32.mrb[0].mxu0
  %153 = vmatprep.mubr.f32.mxu0 %v72
  %154 = vmatmul.mubr.f32.gmra.mrb[0].mxu0 %v34
  %v155 = vpop.f32.mrb[0].mxu0
  %v156 = vadd.f32 %v59, %v155
  %v157 = vpop.f32.mrb[0].mxu0
  %158 = vdwg.mxu0
  %v159 = vld [vmem:[%s3] sm:$0x1]
  %v161 = vlaneseq
  %v162 = vshrl.u32 %v161, 7
  %v163 = vsub.s32 0, %v162
  %v164 = vrot.slane %v159, %v163
  %v166 = vmul.f32 %v141, %v164
  %v167 = vmul.f32 %v146, %v164
  %v168 = vmul.f32 %v151, %v164
  %v169 = vmul.f32 %v156, %v164
  %v170 = vld [vmem:[%s4] sm:$0x1]
  %v172 = vlaneseq
  %v173 = vshrl.u32 %v172, 7
  %v174 = vsub.s32 0, %v173
  %v175 = vrot.slane %v170, %v174
  %v177 = vadd.f32 %v166, %v175
  %v178 = vadd.f32 %v167, %v175
  %v179 = vadd.f32 %v168, %v175
  %v180 = vadd.f32 %v169, %v175
  %v181 = vld [vmem:[%s5] sm:$0x1]
  %v183 = vlaneseq
  %v184 = vshrl.u32 %v183, 7
  %v185 = vsub.s32 0, %v184
  %v186 = vrot.slane %v181, %v185
  %v188 = vmul.f32 %v177, %v186
  %v189 = vmul.f32 %v178, %v186
  %v190 = vmul.f32 %v179, %v186
  %v191 = vmul.f32 %v180, %v186
  %v192 = vld [vmem:[%s6] sm:$0x1]
  %v194 = vlaneseq
  %v195 = vshrl.u32 %v194, 7
  %v196 = vsub.s32 0, %v195
  %v197 = vrot.slane %v192, %v196
  %v199 = vadd.f32 %v188, %v197
  %v200 = vadd.f32 %v189, %v197
  %v201 = vadd.f32 %v190, %v197
  %v202 = vadd.f32 %v191, %v197
  %vm203 = vcmp.ge.f32.partialorder %v199, 0.0
  %vm204 = vcmp.ge.f32.partialorder %v200, 0.0
  %vm205 = vcmp.ge.f32.partialorder %v201, 0.0
  %vm206 = vcmp.ge.f32.partialorder %v202, 0.0
  %v207 = vmul.f32 %v199, 0.01
  %v208 = vmul.f32 %v200, 0.01
  %v209 = vmul.f32 %v201, 0.01
  %v210 = vmul.f32 %v202, 0.01
  %v211 = vsel %vm203, %v199, %v207
  %v212 = vsel %vm204, %v200, %v208
  %v213 = vsel %vm205, %v201, %v209
  %v214 = vsel %vm206, %v202, %v210
  %vm215 = vcmask 261120
  %216 = vst.msk [vmem:[%s7] sm:$0xff] %vm215, %v177
  %217 = vst.msk [vmem:[%s7 + $0x8] sm:$0xff] %vm215, %v178
  %218 = vst.msk [vmem:[%s7 + $0x10] sm:$0xff] %vm215, %v179
  %219 = vst.msk [vmem:[%s7 + $0x18] sm:$0xff] %vm215, %v180
  %220 = vst.msk [vmem:[%s8] sm:$0xff] %vm215, %v211
  %221 = vst.msk [vmem:[%s8 + $0x8] sm:$0xff] %vm215, %v212
  %222 = vst.msk [vmem:[%s8 + $0x10] sm:$0xff] %vm215, %v213
  %223 = vst.msk [vmem:[%s8 + $0x18] sm:$0xff] %vm215, %v214
  // Predicated region
  $region30: #{encoder_forward.9} parent=0 // pred_check
    _
  $region31: #{encoder_forward.9} parent=0 // pred_check_branch
    %225 = sbr.rel (0) target = $region33
  $region32: #{encoder_forward.9} parent=0 // pred_region
    _
  $region33: #{encoder_forward.9} parent=0 // pred_fallthru
    _
  // Predicated region
  $region34: #{encoder_forward.9} parent=0 // pred_check
    _
  $region35: #{encoder_forward.9} parent=0 // pred_check_branch
    %227 = sbr.rel (0) target = $region37
  $region36: #{encoder_forward.9} parent=0 // pred_region
    _
  $region37: #{encoder_forward.9} parent=0 // pred_fallthru
    _
  // Predicated region
  $region38: #{encoder_forward.9} parent=0 // pred_check
    _
  $region39: #{encoder_forward.9} parent=0 // pred_check_branch
    %229 = sbr.rel (0) target = $region41
  $region40: #{encoder_forward.9} parent=0 // pred_region
    _
  $region41: #{encoder_forward.9} parent=0 // pred_fallthru
    _
  // Predicated region
  $region42: #{encoder_forward.9} parent=0 // pred_check
    _
  $region43: #{encoder_forward.9} parent=0 // pred_check_branch
    %231 = sbr.rel (0) target = $region45
  $region44: #{encoder_forward.9} parent=0 // pred_region
    _
  $region45: #{encoder_forward.9} parent=0 // pred_fallthru
    _

// kernel: encoder_forward.10
$region0: #{encoder_forward.10}
  #allocation0 [shape = 'u32[]', space=smem, size = 0x4, offset = 0x4, fixed_abs, tag = 'smem constant byte address 0x4 - core index']
  #allocation1 [shape = 'u32[144,128]{1,0:T(1,128)}', space=vmem, size = 0x12000, scoped, tag = 'internal scratch']
  %s0 = inlined_call_operand.vmem [shape: f32[32,288], index: 0, kind: input, shape index: {}]
  %s1 = inlined_call_operand.vmem [shape: f32[288,32], index: 1, kind: input, shape index: {}]
  %s2 = inlined_call_operand.vmem [shape: f32[1,32], index: 2, kind: input, shape index: {}]
  %s3 = inlined_call_operand.vmem [shape: f32[1,32], index: 3, kind: input, shape index: {}]
  %s4 = inlined_call_operand.vmem [shape: f32[1,32], index: 4, kind: input, shape index: {}]
  %s5 = inlined_call_operand.vmem [shape: f32[32,32], index: 5, kind: output, shape index: {}]
  %s6 = sld [smem:[#allocation0]]
  $region30: #{encoder_forward.10} parent=0
    _
  %s8 = ssub.s32 1, %s6
  %s9 = scalar_select 0, %s8, %s6
  // Predicated region
  $region2: #{encoder_forward.10} parent=0 // pred_check
    _
  $region3: #{encoder_forward.10} parent=0 // pred_check_branch
    %11 = sbr.rel (0) target = $region5
  $region4: #{encoder_forward.10} parent=0 // pred_region
    _
  $region5: #{encoder_forward.10} parent=0 // pred_fallthru
    _
  // Predicated region
  $region6: #{encoder_forward.10} parent=0 // pred_check
    _
  $region7: #{encoder_forward.10} parent=0 // pred_check_branch
    %13 = sbr.rel (0) target = $region9
  $region8: #{encoder_forward.10} parent=0 // pred_region
    _
  $region9: #{encoder_forward.10} parent=0 // pred_fallthru
    _
  // Predicated region
  $region10: #{encoder_forward.10} parent=0 // pred_check
    _
  $region11: #{encoder_forward.10} parent=0 // pred_check_branch
    %15 = sbr.rel (0) target = $region13
  $region12: #{encoder_forward.10} parent=0 // pred_region
    _
  $region13: #{encoder_forward.10} parent=0 // pred_fallthru
    _
  // Predicated region
  $region14: #{encoder_forward.10} parent=0 // pred_check
    _
  $region15: #{encoder_forward.10} parent=0 // pred_check_branch
    %17 = sbr.rel (0) target = $region17
  $region16: #{encoder_forward.10} parent=0 // pred_region
    _
  $region17: #{encoder_forward.10} parent=0 // pred_fallthru
    _
  // Predicated region
  $region18: #{encoder_forward.10} parent=0 // pred_check
    _
  $region19: #{encoder_forward.10} parent=0 // pred_check_branch
    %19 = sbr.rel (0) target = $region21
  $region20: #{encoder_forward.10} parent=0 // pred_region
    _
  $region21: #{encoder_forward.10} parent=0 // pred_fallthru
    _
  %v20 = vld [vmem:[%s0] sm:$0xff]
  %v21 = vld [vmem:[%s0 + $0x8] sm:$0xff]
  %v22 = vld [vmem:[%s0 + $0x10] sm:$0xff]
  %v23 = vld [vmem:[%s0 + $0x18] sm:$0xff]
  %v24 = vld [vmem:[%s0 + $0x20] sm:$0xff]
  %v25 = vld [vmem:[%s0 + $0x28] sm:$0xff]
  %v26 = vld [vmem:[%s0 + $0x30] sm:$0xff]
  %v27 = vld [vmem:[%s0 + $0x38] sm:$0xff]
  %v28 = vld [vmem:[%s0 + $0x40] sm:$0xff]
  %v29 = vld [vmem:[%s0 + $0x48] sm:$0xff]
  %v30 = vld [vmem:[%s0 + $0x50] sm:$0xff]
  %v31 = vld [vmem:[%s0 + $0x58] sm:$0xff]
  %v32 = vld [vmem:[%s1] sm:$0xff]
  %v33 = vld [vmem:[%s1 + $0x8] sm:$0xff]
  %v34 = vld [vmem:[%s1 + $0x10] sm:$0xff]
  %v35 = vld [vmem:[%s1 + $0x18] sm:$0xff]
  %v36 = vld [vmem:[%s1 + $0x20] sm:$0xff]
  %v37 = vld [vmem:[%s1 + $0x28] sm:$0xff]
  %v38 = vld [vmem:[%s1 + $0x30] sm:$0xff]
  %v39 = vld [vmem:[%s1 + $0x38] sm:$0xff]
  %v40 = vld [vmem:[%s1 + $0x40] sm:$0xff]
  %v41 = vld [vmem:[%s1 + $0x48] sm:$0xff]
  %v42 = vld [vmem:[%s1 + $0x50] sm:$0xff]
  %v43 = vld [vmem:[%s1 + $0x58] sm:$0xff]
  %v44 = vld [vmem:[%s1 + $0x60] sm:$0xff]
  %v45 = vld [vmem:[%s1 + $0x68] sm:$0xff]
  %v46 = vld [vmem:[%s1 + $0x70] sm:$0xff]
  %v47 = vld [vmem:[%s1 + $0x78] sm:$0xff]
  %v48 = vld [vmem:[%s1 + $0x80] sm:$0xff]
  %v49 = vld [vmem:[%s1 + $0x88] sm:$0xff]
  %v50 = vld [vmem:[%s1 + $0x90] sm:$0xff]
  %v51 = vld [vmem:[%s1 + $0x98] sm:$0xff]
  %v52 = vld [vmem:[%s1 + $0xa0] sm:$0xff]
  %v53 = vld [vmem:[%s1 + $0xa8] sm:$0xff]
  %v54 = vld [vmem:[%s1 + $0xb0] sm:$0xff]
  %v55 = vld [vmem:[%s1 + $0xb8] sm:$0xff]
  %v56 = vld [vmem:[%s1 + $0xc0] sm:$0xff]
  %v57 = vld [vmem:[%s1 + $0xc8] sm:$0xff]
  %v58 = vld [vmem:[%s1 + $0xd0] sm:$0xff]
  %v59 = vld [vmem:[%s1 + $0xd8] sm:$0xff]
  %v60 = vld [vmem:[%s1 + $0xe0] sm:$0xff]
  %v61 = vld [vmem:[%s1 + $0xe8] sm:$0xff]
  %v62 = vld [vmem:[%s1 + $0xf0] sm:$0xff]
  %v63 = vld [vmem:[%s1 + $0xf8] sm:$0xff]
  %v64 = vld [vmem:[%s1 + $0x100] sm:$0xff]
  %v65 = vld [vmem:[%s1 + $0x108] sm:$0xff]
  %v66 = vld [vmem:[%s1 + $0x110] sm:$0xff]
  %v67 = vld [vmem:[%s1 + $0x118] sm:$0xff]
  %v68 = vld [vmem:[%s2] sm:$0x1]
  %v70 = vlaneseq
  %v71 = vshrl.u32 %v70, 7
  %v72 = vsub.s32 0, %v71
  %v73 = vrot.slane %v68, %v72
  %vm75 = vcmask 261120
  %v77 = vsel %vm75, %v22, 0
  %v80 = vsel %vm75, %v25, 0
  %v83 = vsel %vm75, %v28, 0
  %v86 = vsel %vm75, %v31, 0
  %88 = vmatprep.subr.mxu0 0.0
  %89 = vmatpush1.msra.mxu0 %v32
  %90 = vmatprep.subr.mxu0 0.0
  %91 = vmatpush1.msra.mxu0 %v33
  %92 = vmatprep.subr.mxu0 0.0
  %93 = vmatpush1.msra.mxu0 %v34
  %94 = vmatprep.subr.mxu0 0.0
  %95 = vmatpush1.msra.mxu0 %v35
  %96 = vmatprep.subr.mxu0 0.0
  %97 = vmatpush1.msra.mxu0 %v36
  %98 = vmatprep.subr.mxu0 0.0
  %99 = vmatpush1.msra.mxu0 %v37
  %100 = vmatprep.subr.mxu0 0.0
  %101 = vmatpush1.msra.mxu0 %v38
  %102 = vmatprep.subr.mxu0 0.0
  %103 = vmatpush1.msra.mxu0 %v39
  %104 = vmatprep.subr.mxu0 0.0
  %105 = vmatpush1.msra.mxu0 %v40
  %106 = vmatprep.subr.mxu0 0.0
  %107 = vmatpush1.msra.mxu0 %v41
  %108 = vmatprep.subr.mxu0 0.0
  %109 = vmatpush1.msra.mxu0 %v42
  %110 = vmatprep.subr.mxu0 0.0
  %111 = vmatpush1.msra.mxu0 %v43
  %112 = vmatprep.subr.mxu0 0.0
  %113 = vmatpush1.msra.mxu0 %v44
  %114 = vmatprep.subr.mxu0 0.0
  %115 = vmatpush1.msra.mxu0 %v45
  %116 = vmatprep.subr.mxu0 0.0
  %117 = vmatpush1.msra.mxu0 %v46
  %118 = vmatprep.subr.mxu0 0.0
  %119 = vmatpush1.msra.mxu0 %v47
  %120 = vmatprep.subr.mxu0 0.0
  %121 = vmatpush1.msra.mxu0 %v48
  %122 = vmatprep.subr.mxu0 0.0
  %123 = vmatpush1.msra.mxu0 %v49
  %124 = vmatprep.subr.mxu0 0.0
  %125 = vmatpush1.msra.mxu0 %v50
  %126 = vmatprep.subr.mxu0 0.0
  %127 = vmatpush1.msra.mxu0 %v51
  %128 = vmatprep.subr.mxu0 0.0
  %129 = vmatpush1.msra.mxu0 %v52
  %130 = vmatprep.subr.mxu0 0.0
  %131 = vmatpush1.msra.mxu0 %v53
  %132 = vmatprep.subr.mxu0 0.0
  %133 = vmatpush1.msra.mxu0 %v54
  %134 = vmatprep.subr.mxu0 0.0
  %135 = vmatpush1.msra.mxu0 %v55
  %136 = vmatprep.subr.mxu0 0.0
  %137 = vmatpush1.msra.mxu0 %v56
  %138 = vmatprep.subr.mxu0 0.0
  %139 = vmatpush1.msra.mxu0 %v57
  %140 = vmatprep.subr.mxu0 0.0
  %141 = vmatpush1.msra.mxu0 %v58
  %142 = vmatprep.subr.mxu0 0.0
  %143 = vmatpush1.msra.mxu0 %v59
  %144 = vmatprep.subr.mxu0 0.0
  %145 = vmatpush1.msra.mxu0 %v60
  %146 = vmatprep.subr.mxu0 0.0
  %147 = vmatpush1.msra.mxu0 %v61
  %148 = vmatprep.subr.mxu0 0.0
  %149 = vmatpush1.msra.mxu0 %v62
  %150 = vmatprep.subr.mxu0 0.0
  %151 = vmatpush1.msra.mxu0 %v63
  %152 = vmatprep.mubr.f32.mxu0 %v21
  %153 = vmatmul.mubr.f32.gmra.mrb[0].mxu0 %v20
  %v154 = vpop.f32.mrb[0].mxu0
  %v155 = vadd.f32 %v73, %v154
  %v156 = vpop.f32.mrb[0].mxu0
  %157 = vmatprep.mubr.f32.mxu0 %v24
  %158 = vmatmul.mubr.f32.gmra.mrb[0].mxu0 %v23
  %v159 = vpop.f32.mrb[0].mxu0
  %v160 = vadd.f32 %v73, %v159
  %v161 = vpop.f32.mrb[0].mxu0
  %162 = vmatprep.mubr.f32.mxu0 %v27
  %163 = vmatmul.mubr.f32.gmra.mrb[0].mxu0 %v26
  %v164 = vpop.f32.mrb[0].mxu0
  %v165 = vadd.f32 %v73, %v164
  %v166 = vpop.f32.mrb[0].mxu0
  %167 = vmatprep.mubr.f32.mxu0 %v30
  %168 = vmatmul.mubr.f32.gmra.mrb[0].mxu0 %v29
  %v169 = vpop.f32.mrb[0].mxu0
  %v170 = vadd.f32 %v73, %v169
  %v171 = vpop.f32.mrb[0].mxu0
  %172 = vdwg.mxu0
  %173 = vmatprep.subr.mxu0 0.0
  %174 = vmatpush1.msra.mxu0 %v64
  %175 = vmatprep.subr.mxu0 0.0
  %176 = vmatpush1.msra.mxu0 %v65
  %177 = vmatprep.subr.mxu0 0.0
  %178 = vmatpush1.msra.mxu0 %v66
  %179 = vmatprep.subr.mxu0 0.0
  %180 = vmatpush1.msra.mxu0 %v67
  %181 = vmatprep.subr.mxu0 0.0
  %182 = vmatpush1.msra.mxu0 0.0
  %183 = vmatprep.subr.mxu0 0.0
  %184 = vmatpush1.msra.mxu0 0.0
  %185 = vmatprep.subr.mxu0 0.0
  %186 = vmatpush1.msra.mxu0 0.0
  %187 = vmatprep.subr.mxu0 0.0
  %188 = vmatpush1.msra.mxu0 0.0
  %189 = vmatprep.subr.mxu0 0.0
  %190 = vmatpush1.msra.mxu0 0.0
  %191 = vmatprep.subr.mxu0 0.0
  %192 = vmatpush1.msra.mxu0 0.0
  %193 = vmatprep.subr.mxu0 0.0
  %194 = vmatpush1.msra.mxu0 0.0
  %195 = vmatprep.subr.mxu0 0.0
  %196 = vmatpush1.msra.mxu0 0.0
  %197 = vmatprep.subr.mxu0 0.0
  %198 = vmatpush1.msra.mxu0 0.0
  %199 = vmatprep.subr.mxu0 0.0
  %200 = vmatpush1.msra.mxu0 0.0
  %201 = vmatprep.subr.mxu0 0.0
  %202 = vmatpush1.msra.mxu0 0.0
  %203 = vmatprep.subr.mxu0 0.0
  %204 = vmatpush1.msra.mxu0 0.0
  %205 = vmatprep.subr.mxu0 0.0
  %206 = vmatpush1.msra.mxu0 0.0
  %207 = vmatprep.subr.mxu0 0.0
  %208 = vmatpush1.msra.mxu0 0.0
  %209 = vmatprep.subr.mxu0 0.0
  %210 = vmatpush1.msra.mxu0 0.0
  %211 = vmatprep.subr.mxu0 0.0
  %212 = vmatpush1.msra.mxu0 0.0
  %213 = vmatprep.subr.mxu0 0.0
  %214 = vmatpush1.msra.mxu0 0.0
  %215 = vmatprep.subr.mxu0 0.0
  %216 = vmatpush1.msra.mxu0 0.0
  %217 = vmatprep.subr.mxu0 0.0
  %218 = vmatpush1.msra.mxu0 0.0
  %219 = vmatprep.subr.mxu0 0.0
  %220 = vmatpush1.msra.mxu0 0.0
  %221 = vmatprep.subr.mxu0 0.0
  %222 = vmatpush1.msra.mxu0 0.0
  %223 = vmatprep.subr.mxu0 0.0
  %224 = vmatpush1.msra.mxu0 0.0
  %225 = vmatprep.subr.mxu0 0.0
  %226 = vmatpush1.msra.mxu0 0.0
  %227 = vmatprep.subr.mxu0 0.0
  %228 = vmatpush1.msra.mxu0 0.0
  %229 = vmatprep.subr.mxu0 0.0
  %230 = vmatpush1.msra.mxu0 0.0
  %231 = vmatprep.subr.mxu0 0.0
  %232 = vmatpush1.msra.mxu0 0.0
  %233 = vmatprep.subr.mxu0 0.0
  %234 = vmatpush1.msra.mxu0 0.0
  %235 = vmatprep.subr.mxu0 0.0
  %236 = vmatpush1.msra.mxu0 0.0
  %237 = vmatprep.mubr.f32.mxu0 0.0
  %238 = vmatmul.mubr.f32.gmra.mrb[0].mxu0 %v77
  %v239 = vpop.f32.mrb[0].mxu0
  %v240 = vadd.f32 %v155, %v239
  %v241 = vpop.f32.mrb[0].mxu0
  %242 = vmatprep.mubr.f32.mxu0 0.0
  %243 = vmatmul.mubr.f32.gmra.mrb[0].mxu0 %v80
  %v244 = vpop.f32.mrb[0].mxu0
  %v245 = vadd.f32 %v160, %v244
  %v246 = vpop.f32.mrb[0].mxu0
  %247 = vmatprep.mubr.f32.mxu0 0.0
  %248 = vmatmul.mubr.f32.gmra.mrb[0].mxu0 %v83
  %v249 = vpop.f32.mrb[0].mxu0
  %v250 = vadd.f32 %v165, %v249
  %v251 = vpop.f32.mrb[0].mxu0
  %252 = vmatprep.mubr.f32.mxu0 0.0
  %253 = vmatmul.mubr.f32.gmra.mrb[0].mxu0 %v86
  %v254 = vpop.f32.mrb[0].mxu0
  %v255 = vadd.f32 %v170, %v254
  %v256 = vpop.f32.mrb[0].mxu0
  %257 = vdwg.mxu0
  %v258 = vld [vmem:[%s3] sm:$0x1]
  %v260 = vlaneseq
  %v261 = vshrl.u32 %v260, 7
  %v262 = vsub.s32 0, %v261
  %v263 = vrot.slane %v258, %v262
  %v265 = vmul.f32 %v240, %v263
  %v266 = vmul.f32 %v245, %v263
  %v267 = vmul.f32 %v250, %v263
  %v268 = vmul.f32 %v255, %v263
  %v269 = vld [vmem:[%s4] sm:$0x1]
  %v271 = vlaneseq
  %v272 = vshrl.u32 %v271, 7
  %v273 = vsub.s32 0, %v272
  %v274 = vrot.slane %v269, %v273
  %v276 = vadd.f32 %v265, %v274
  %v277 = vadd.f32 %v266, %v274
  %v278 = vadd.f32 %v267, %v274
  %v279 = vadd.f32 %v268, %v274
  %vm280 = vcmp.ge.f32.partialorder %v276, 0.0
  %vm281 = vcmp.ge.f32.partialorder %v277, 0.0
  %vm282 = vcmp.ge.f32.partialorder %v278, 0.0
  %vm283 = vcmp.ge.f32.partialorder %v279, 0.0
  %v284 = vmul.f32 %v276, 0.01
  %v285 = vmul.f32 %v277, 0.01
  %v286 = vmul.f32 %v278, 0.01
  %v287 = vmul.f32 %v279, 0.01
  %v288 = vsel %vm280, %v276, %v284
  %v289 = vsel %vm281, %v277, %v285
  %v290 = vsel %vm282, %v278, %v286
  %v291 = vsel %vm283, %v279, %v287
  %292 = vst.msk [vmem:[%s5] sm:$0xff] %vm75, %v288
  %293 = vst.msk [vmem:[%s5 + $0x8] sm:$0xff] %vm75, %v289
  %294 = vst.msk [vmem:[%s5 + $0x10] sm:$0xff] %vm75, %v290
  %295 = vst.msk [vmem:[%s5 + $0x18] sm:$0xff] %vm75, %v291
  // Predicated region
  $region22: #{encoder_forward.10} parent=0 // pred_check
    _
  $region23: #{encoder_forward.10} parent=0 // pred_check_branch
    %297 = sbr.rel (0) target = $region25
  $region24: #{encoder_forward.10} parent=0 // pred_region
    _
  $region25: #{encoder_forward.10} parent=0 // pred_fallthru
    _
  // Predicated region
  $region26: #{encoder_forward.10} parent=0 // pred_check
    _
  $region27: #{encoder_forward.10} parent=0 // pred_check_branch
    %299 = sbr.rel (0) target = $region29
  $region28: #{encoder_forward.10} parent=0 // pred_region
    _
  $region29: #{encoder_forward.10} parent=0 // pred_fallthru
    _

// kernel: encoder_forward.11
$region0: #{encoder_forward.11}
  #allocation0 [shape = 'u32[]', space=smem, size = 0x4, offset = 0x4, fixed_abs, tag = 'smem constant byte address 0x4 - core index']
  #allocation1 [shape = 'u32[144,128]{1,0:T(1,128)}', space=vmem, size = 0x12000, scoped, tag = 'internal scratch']
  %s0 = inlined_call_operand.vmem [shape: f32[32,288], index: 0, kind: input, shape index: {}]
  %s1 = inlined_call_operand.vmem [shape: f32[288,32], index: 1, kind: input, shape index: {}]
  %s2 = inlined_call_operand.vmem [shape: f32[1,32], index: 2, kind: input, shape index: {}]
  %s3 = inlined_call_operand.vmem [shape: f32[32,32], index: 3, kind: input, shape index: {}]
  %s4 = inlined_call_operand.vmem [shape: f32[1,32], index: 4, kind: input, shape index: {}]
  %s5 = inlined_call_operand.vmem [shape: f32[1,32], index: 5, kind: input, shape index: {}]
  %s6 = inlined_call_operand.vmem [shape: f32[32,32], index: 6, kind: input, shape index: {}]
  %s7 = inlined_call_operand.vmem [shape: f32[1,32], index: 7, kind: input, shape index: {}]
  %s8 = inlined_call_operand.hbm [shape: f32[32,32], index: 8, kind: output, shape index: {}]
  %s9 = sld [smem:[#allocation0]]
  $region42: #{encoder_forward.11} parent=0
    _
  %s11 = ssub.s32 1, %s9
  %s12 = scalar_select 0, %s11, %s9
  $region1: #{encoder_forward.11} parent=0
    #allocation2 [shape = 'u8[16384]{0}', space=vmem, size = 0x4000, scoped, tag = 'output window, operand 0, single buffered']
    #allocation3 [shape = 's32[1]{0}', space=sflag, size = 0x4, scoped, tag = 'scoped memory for encoder_forward.11']
    %13 = vsyncpa [#allocation3], 0
    // Predicated region
    $region2: #{encoder_forward.11} parent=1 // pred_check
      _
    $region3: #{encoder_forward.11} parent=1 // pred_check_branch
      %15 = sbr.rel (0) target = $region5
    $region4: #{encoder_forward.11} parent=1 // pred_region
      _
    $region5: #{encoder_forward.11} parent=1 // pred_fallthru
      _
    // Predicated region
    $region6: #{encoder_forward.11} parent=1 // pred_check
      _
    $region7: #{encoder_forward.11} parent=1 // pred_check_branch
      %17 = sbr.rel (0) target = $region9
    $region8: #{encoder_forward.11} parent=1 // pred_region
      _
    $region9: #{encoder_forward.11} parent=1 // pred_fallthru
      _
    // Predicated region
    $region10: #{encoder_forward.11} parent=1 // pred_check
      _
    $region11: #{encoder_forward.11} parent=1 // pred_check_branch
      %19 = sbr.rel (0) target = $region13
    $region12: #{encoder_forward.11} parent=1 // pred_region
      _
    $region13: #{encoder_forward.11} parent=1 // pred_fallthru
      _
    // Predicated region
    $region14: #{encoder_forward.11} parent=1 // pred_check
      _
    $region15: #{encoder_forward.11} parent=1 // pred_check_branch
      %21 = sbr.rel (0) target = $region17
    $region16: #{encoder_forward.11} parent=1 // pred_region
      _
    $region17: #{encoder_forward.11} parent=1 // pred_fallthru
      _
    // Predicated region
    $region18: #{encoder_forward.11} parent=1 // pred_check
      _
    $region19: #{encoder_forward.11} parent=1 // pred_check_branch
      %23 = sbr.rel (0) target = $region21
    $region20: #{encoder_forward.11} parent=1 // pred_region
      _
    $region21: #{encoder_forward.11} parent=1 // pred_fallthru
      _
    // Predicated region
    $region22: #{encoder_forward.11} parent=1 // pred_check
      _
    $region23: #{encoder_forward.11} parent=1 // pred_check_branch
      %25 = sbr.rel (0) target = $region25
    $region24: #{encoder_forward.11} parent=1 // pred_region
      _
    $region25: #{encoder_forward.11} parent=1 // pred_fallthru
      _
    // Predicated region
    $region26: #{encoder_forward.11} parent=1 // pred_check
      _
    $region27: #{encoder_forward.11} parent=1 // pred_check_branch
      %27 = sbr.rel (0) target = $region29
    $region28: #{encoder_forward.11} parent=1 // pred_region
      _
    $region29: #{encoder_forward.11} parent=1 // pred_fallthru
      _
    // Predicated region
    $region30: #{encoder_forward.11} parent=1 // pred_check
      _
    $region31: #{encoder_forward.11} parent=1 // pred_check_branch
      %29 = sbr.rel (0) target = $region33
    $region32: #{encoder_forward.11} parent=1 // pred_region
      _
    $region33: #{encoder_forward.11} parent=1 // pred_fallthru
      _
    %v30 = vld [vmem:[%s0] sm:$0xff]
    %v31 = vld [vmem:[%s0 + $0x8] sm:$0xff]
    %v32 = vld [vmem:[%s0 + $0x10] sm:$0xff]
    %v33 = vld [vmem:[%s0 + $0x18] sm:$0xff]
    %v34 = vld [vmem:[%s0 + $0x20] sm:$0xff]
    %v35 = vld [vmem:[%s0 + $0x28] sm:$0xff]
    %v36 = vld [vmem:[%s0 + $0x30] sm:$0xff]
    %v37 = vld [vmem:[%s0 + $0x38] sm:$0xff]
    %v38 = vld [vmem:[%s0 + $0x40] sm:$0xff]
    %v39 = vld [vmem:[%s0 + $0x48] sm:$0xff]
    %v40 = vld [vmem:[%s0 + $0x50] sm:$0xff]
    %v41 = vld [vmem:[%s0 + $0x58] sm:$0xff]
    %v42 = vld [vmem:[%s1] sm:$0xff]
    %v43 = vld [vmem:[%s1 + $0x8] sm:$0xff]
    %v44 = vld [vmem:[%s1 + $0x10] sm:$0xff]
    %v45 = vld [vmem:[%s1 + $0x18] sm:$0xff]
    %v46 = vld [vmem:[%s1 + $0x20] sm:$0xff]
    %v47 = vld [vmem:[%s1 + $0x28] sm:$0xff]
    %v48 = vld [vmem:[%s1 + $0x30] sm:$0xff]
    %v49 = vld [vmem:[%s1 + $0x38] sm:$0xff]
    %v50 = vld [vmem:[%s1 + $0x40] sm:$0xff]
    %v51 = vld [vmem:[%s1 + $0x48] sm:$0xff]
    %v52 = vld [vmem:[%s1 + $0x50] sm:$0xff]
    %v53 = vld [vmem:[%s1 + $0x58] sm:$0xff]
    %v54 = vld [vmem:[%s1 + $0x60] sm:$0xff]
    %v55 = vld [vmem:[%s1 + $0x68] sm:$0xff]
    %v56 = vld [vmem:[%s1 + $0x70] sm:$0xff]
    %v57 = vld [vmem:[%s1 + $0x78] sm:$0xff]
    %v58 = vld [vmem:[%s1 + $0x80] sm:$0xff]
    %v59 = vld [vmem:[%s1 + $0x88] sm:$0xff]
    %v60 = vld [vmem:[%s1 + $0x90] sm:$0xff]
    %v61 = vld [vmem:[%s1 + $0x98] sm:$0xff]
    %v62 = vld [vmem:[%s1 + $0xa0] sm:$0xff]
    %v63 = vld [vmem:[%s1 + $0xa8] sm:$0xff]
    %v64 = vld [vmem:[%s1 + $0xb0] sm:$0xff]
    %v65 = vld [vmem:[%s1 + $0xb8] sm:$0xff]
    %v66 = vld [vmem:[%s1 + $0xc0] sm:$0xff]
    %v67 = vld [vmem:[%s1 + $0xc8] sm:$0xff]
    %v68 = vld [vmem:[%s1 + $0xd0] sm:$0xff]
    %v69 = vld [vmem:[%s1 + $0xd8] sm:$0xff]
    %v70 = vld [vmem:[%s1 + $0xe0] sm:$0xff]
    %v71 = vld [vmem:[%s1 + $0xe8] sm:$0xff]
    %v72 = vld [vmem:[%s1 + $0xf0] sm:$0xff]
    %v73 = vld [vmem:[%s1 + $0xf8] sm:$0xff]
    %v74 = vld [vmem:[%s1 + $0x100] sm:$0xff]
    %v75 = vld [vmem:[%s1 + $0x108] sm:$0xff]
    %v76 = vld [vmem:[%s1 + $0x110] sm:$0xff]
    %v77 = vld [vmem:[%s1 + $0x118] sm:$0xff]
    %v78 = vld [vmem:[%s2] sm:$0x1]
    %v80 = vlaneseq
    %v81 = vshrl.u32 %v80, 7
    %v82 = vsub.s32 0, %v81
    %v83 = vrot.slane %v78, %v82
    %vm85 = vcmask 261120
    %v87 = vsel %vm85, %v32, 0
    %v90 = vsel %vm85, %v35, 0
    %v93 = vsel %vm85, %v38, 0
    %v96 = vsel %vm85, %v41, 0
    %98 = vmatprep.subr.mxu0 0.0
    %99 = vmatpush1.msra.mxu0 %v42
    %100 = vmatprep.subr.mxu0 0.0
    %101 = vmatpush1.msra.mxu0 %v43
    %102 = vmatprep.subr.mxu0 0.0
    %103 = vmatpush1.msra.mxu0 %v44
    %104 = vmatprep.subr.mxu0 0.0
    %105 = vmatpush1.msra.mxu0 %v45
    %106 = vmatprep.subr.mxu0 0.0
    %107 = vmatpush1.msra.mxu0 %v46
    %108 = vmatprep.subr.mxu0 0.0
    %109 = vmatpush1.msra.mxu0 %v47
    %110 = vmatprep.subr.mxu0 0.0
    %111 = vmatpush1.msra.mxu0 %v48
    %112 = vmatprep.subr.mxu0 0.0
    %113 = vmatpush1.msra.mxu0 %v49
    %114 = vmatprep.subr.mxu0 0.0
    %115 = vmatpush1.msra.mxu0 %v50
    %116 = vmatprep.subr.mxu0 0.0
    %117 = vmatpush1.msra.mxu0 %v51
    %118 = vmatprep.subr.mxu0 0.0
    %119 = vmatpush1.msra.mxu0 %v52
    %120 = vmatprep.subr.mxu0 0.0
    %121 = vmatpush1.msra.mxu0 %v53
    %122 = vmatprep.subr.mxu0 0.0
    %123 = vmatpush1.msra.mxu0 %v54
    %124 = vmatprep.subr.mxu0 0.0
    %125 = vmatpush1.msra.mxu0 %v55
    %126 = vmatprep.subr.mxu0 0.0
    %127 = vmatpush1.msra.mxu0 %v56
    %128 = vmatprep.subr.mxu0 0.0
    %129 = vmatpush1.msra.mxu0 %v57
    %130 = vmatprep.subr.mxu0 0.0
    %131 = vmatpush1.msra.mxu0 %v58
    %132 = vmatprep.subr.mxu0 0.0
    %133 = vmatpush1.msra.mxu0 %v59
    %134 = vmatprep.subr.mxu0 0.0
    %135 = vmatpush1.msra.mxu0 %v60
    %136 = vmatprep.subr.mxu0 0.0
    %137 = vmatpush1.msra.mxu0 %v61
    %138 = vmatprep.subr.mxu0 0.0
    %139 = vmatpush1.msra.mxu0 %v62
    %140 = vmatprep.subr.mxu0 0.0
    %141 = vmatpush1.msra.mxu0 %v63
    %142 = vmatprep.subr.mxu0 0.0
    %143 = vmatpush1.msra.mxu0 %v64
    %144 = vmatprep.subr.mxu0 0.0
    %145 = vmatpush1.msra.mxu0 %v65
    %146 = vmatprep.subr.mxu0 0.0
    %147 = vmatpush1.msra.mxu0 %v66
    %148 = vmatprep.subr.mxu0 0.0
    %149 = vmatpush1.msra.mxu0 %v67
    %150 = vmatprep.subr.mxu0 0.0
    %151 = vmatpush1.msra.mxu0 %v68
    %152 = vmatprep.subr.mxu0 0.0
    %153 = vmatpush1.msra.mxu0 %v69
    %154 = vmatprep.subr.mxu0 0.0
    %155 = vmatpush1.msra.mxu0 %v70
    %156 = vmatprep.subr.mxu0 0.0
    %157 = vmatpush1.msra.mxu0 %v71
    %158 = vmatprep.subr.mxu0 0.0
    %159 = vmatpush1.msra.mxu0 %v72
    %160 = vmatprep.subr.mxu0 0.0
    %161 = vmatpush1.msra.mxu0 %v73
    %162 = vmatprep.mubr.f32.mxu0 %v31
    %163 = vmatmul.mubr.f32.gmra.mrb[0].mxu0 %v30
    %v164 = vpop.f32.mrb[0].mxu0
    %v165 = vadd.f32 %v83, %v164
    %v166 = vpop.f32.mrb[0].mxu0
    %167 = vmatprep.mubr.f32.mxu0 %v34
    %168 = vmatmul.mubr.f32.gmra.mrb[0].mxu0 %v33
    %v169 = vpop.f32.mrb[0].mxu0
    %v170 = vadd.f32 %v83, %v169
    %v171 = vpop.f32.mrb[0].mxu0
    %172 = vmatprep.mubr.f32.mxu0 %v37
    %173 = vmatmul.mubr.f32.gmra.mrb[0].mxu0 %v36
    %v174 = vpop.f32.mrb[0].mxu0
    %v175 = vadd.f32 %v83, %v174
    %v176 = vpop.f32.mrb[0].mxu0
    %177 = vmatprep.mubr.f32.mxu0 %v40
    %178 = vmatmul.mubr.f32.gmra.mrb[0].mxu0 %v39
    %v179 = vpop.f32.mrb[0].mxu0
    %v180 = vadd.f32 %v83, %v179
    %v181 = vpop.f32.mrb[0].mxu0
    %182 = vdwg.mxu0
    %183 = vmatprep.subr.mxu0 0.0
    %184 = vmatpush1.msra.mxu0 %v74
    %185 = vmatprep.subr.mxu0 0.0
    %186 = vmatpush1.msra.mxu0 %v75
    %187 = vmatprep.subr.mxu0 0.0
    %188 = vmatpush1.msra.mxu0 %v76
    %189 = vmatprep.subr.mxu0 0.0
    %190 = vmatpush1.msra.mxu0 %v77
    %191 = vmatprep.subr.mxu0 0.0
    %192 = vmatpush1.msra.mxu0 0.0
    %193 = vmatprep.subr.mxu0 0.0
    %194 = vmatpush1.msra.mxu0 0.0
    %195 = vmatprep.subr.mxu0 0.0
    %196 = vmatpush1.msra.mxu0 0.0
    %197 = vmatprep.subr.mxu0 0.0
    %198 = vmatpush1.msra.mxu0 0.0
    %199 = vmatprep.subr.mxu0 0.0
    %200 = vmatpush1.msra.mxu0 0.0
    %201 = vmatprep.subr.mxu0 0.0
    %202 = vmatpush1.msra.mxu0 0.0
    %203 = vmatprep.subr.mxu0 0.0
    %204 = vmatpush1.msra.mxu0 0.0
    %205 = vmatprep.subr.mxu0 0.0
    %206 = vmatpush1.msra.mxu0 0.0
    %207 = vmatprep.subr.mxu0 0.0
    %208 = vmatpush1.msra.mxu0 0.0
    %209 = vmatprep.subr.mxu0 0.0
    %210 = vmatpush1.msra.mxu0 0.0
    %211 = vmatprep.subr.mxu0 0.0
    %212 = vmatpush1.msra.mxu0 0.0
    %213 = vmatprep.subr.mxu0 0.0
    %214 = vmatpush1.msra.mxu0 0.0
    %215 = vmatprep.subr.mxu0 0.0
    %216 = vmatpush1.msra.mxu0 0.0
    %217 = vmatprep.subr.mxu0 0.0
    %218 = vmatpush1.msra.mxu0 0.0
    %219 = vmatprep.subr.mxu0 0.0
    %220 = vmatpush1.msra.mxu0 0.0
    %221 = vmatprep.subr.mxu0 0.0
    %222 = vmatpush1.msra.mxu0 0.0
    %223 = vmatprep.subr.mxu0 0.0
    %224 = vmatpush1.msra.mxu0 0.0
    %225 = vmatprep.subr.mxu0 0.0
    %226 = vmatpush1.msra.mxu0 0.0
    %227 = vmatprep.subr.mxu0 0.0
    %228 = vmatpush1.msra.mxu0 0.0
    %229 = vmatprep.subr.mxu0 0.0
    %230 = vmatpush1.msra.mxu0 0.0
    %231 = vmatprep.subr.mxu0 0.0
    %232 = vmatpush1.msra.mxu0 0.0
    %233 = vmatprep.subr.mxu0 0.0
    %234 = vmatpush1.msra.mxu0 0.0
    %235 = vmatprep.subr.mxu0 0.0
    %236 = vmatpush1.msra.mxu0 0.0
    %237 = vmatprep.subr.mxu0 0.0
    %238 = vmatpush1.msra.mxu0 0.0
    %239 = vmatprep.subr.mxu0 0.0
    %240 = vmatpush1.msra.mxu0 0.0
    %241 = vmatprep.subr.mxu0 0.0
    %242 = vmatpush1.msra.mxu0 0.0
    %243 = vmatprep.subr.mxu0 0.0
    %244 = vmatpush1.msra.mxu0 0.0
    %245 = vmatprep.subr.mxu0 0.0
    %246 = vmatpush1.msra.mxu0 0.0
    %247 = vmatprep.mubr.f32.mxu0 0.0
    %248 = vmatmul.mubr.f32.gmra.mrb[0].mxu0 %v87
    %v249 = vpop.f32.mrb[0].mxu0
    %v250 = vadd.f32 %v165, %v249
    %v251 = vpop.f32.mrb[0].mxu0
    %252 = vmatprep.mubr.f32.mxu0 0.0
    %253 = vmatmul.mubr.f32.gmra.mrb[0].mxu0 %v90
    %v254 = vpop.f32.mrb[0].mxu0
    %v255 = vadd.f32 %v170, %v254
    %v256 = vpop.f32.mrb[0].mxu0
    %257 = vmatprep.mubr.f32.mxu0 0.0
    %258 = vmatmul.mubr.f32.gmra.mrb[0].mxu0 %v93
    %v259 = vpop.f32.mrb[0].mxu0
    %v260 = vadd.f32 %v175, %v259
    %v261 = vpop.f32.mrb[0].mxu0
    %262 = vmatprep.mubr.f32.mxu0 0.0
    %263 = vmatmul.mubr.f32.gmra.mrb[0].mxu0 %v96
    %v264 = vpop.f32.mrb[0].mxu0
    %v265 = vadd.f32 %v180, %v264
    %v266 = vpop.f32.mrb[0].mxu0
    %267 = vdwg.mxu0
    %v268 = vld [vmem:[%s3] sm:$0xff]
    %v269 = vld [vmem:[%s3 + $0x8] sm:$0xff]
    %v270 = vld [vmem:[%s3 + $0x10] sm:$0xff]
    %v271 = vld [vmem:[%s3 + $0x18] sm:$0xff]
    %v272 = vadd.f32 %v250, %v268
    %v273 = vadd.f32 %v255, %v269
    %v274 = vadd.f32 %v260, %v270
    %v275 = vadd.f32 %v265, %v271
    %v276 = vld [vmem:[%s4] sm:$0x1]
    %v278 = vlaneseq
    %v279 = vshrl.u32 %v278, 7
    %v280 = vsub.s32 0, %v279
    %v281 = vrot.slane %v276, %v280
    %v283 = vmul.f32 %v272, %v281
    %v284 = vmul.f32 %v273, %v281
    %v285 = vmul.f32 %v274, %v281
    %v286 = vmul.f32 %v275, %v281
    %v287 = vld [vmem:[%s5] sm:$0x1]
    %v289 = vlaneseq
    %v290 = vshrl.u32 %v289, 7
    %v291 = vsub.s32 0, %v290
    %v292 = vrot.slane %v287, %v291
    %v294 = vadd.f32 %v283, %v292
    %v295 = vadd.f32 %v284, %v292
    %v296 = vadd.f32 %v285, %v292
    %v297 = vadd.f32 %v286, %v292
    %v298 = vld [vmem:[%s6] sm:$0xff]
    %v299 = vld [vmem:[%s6 + $0x8] sm:$0xff]
    %v300 = vld [vmem:[%s6 + $0x10] sm:$0xff]
    %v301 = vld [vmem:[%s6 + $0x18] sm:$0xff]
    %v302 = vld [vmem:[%s7] sm:$0x1]
    %v304 = vlaneseq
    %v305 = vshrl.u32 %v304, 7
    %v306 = vsub.s32 0, %v305
    %v307 = vrot.slane %v302, %v306
    %v310 = vsel %vm85, %v294, 0
    %v313 = vsel %vm85, %v295, 0
    %v316 = vsel %vm85, %v296, 0
    %v319 = vsel %vm85, %v297, 0
    %321 = vmatprep.subr.mxu0 0.0
    %322 = vmatpush1.msra.mxu0 %v298
    %323 = vmatprep.subr.mxu0 0.0
    %324 = vmatpush1.msra.mxu0 %v299
    %325 = vmatprep.subr.mxu0 0.0
    %326 = vmatpush1.msra.mxu0 %v300
    %327 = vmatprep.subr.mxu0 0.0
    %328 = vmatpush1.msra.mxu0 %v301
    %329 = vmatprep.subr.mxu0 0.0
    %330 = vmatpush1.msra.mxu0 0.0
    %331 = vmatprep.subr.mxu0 0.0
    %332 = vmatpush1.msra.mxu0 0.0
    %333 = vmatprep.subr.mxu0 0.0
    %334 = vmatpush1.msra.mxu0 0.0
    %335 = vmatprep.subr.mxu0 0.0
    %336 = vmatpush1.msra.mxu0 0.0
    %337 = vmatprep.subr.mxu0 0.0
    %338 = vmatpush1.msra.mxu0 0.0
    %339 = vmatprep.subr.mxu0 0.0
    %340 = vmatpush1.msra.mxu0 0.0
    %341 = vmatprep.subr.mxu0 0.0
    %342 = vmatpush1.msra.mxu0 0.0
    %343 = vmatprep.subr.mxu0 0.0
    %344 = vmatpush1.msra.mxu0 0.0
    %345 = vmatprep.subr.mxu0 0.0
    %346 = vmatpush1.msra.mxu0 0.0
    %347 = vmatprep.subr.mxu0 0.0
    %348 = vmatpush1.msra.mxu0 0.0
    %349 = vmatprep.subr.mxu0 0.0
    %350 = vmatpush1.msra.mxu0 0.0
    %351 = vmatprep.subr.mxu0 0.0
    %352 = vmatpush1.msra.mxu0 0.0
    %353 = vmatprep.subr.mxu0 0.0
    %354 = vmatpush1.msra.mxu0 0.0
    %355 = vmatprep.subr.mxu0 0.0
    %356 = vmatpush1.msra.mxu0 0.0
    %357 = vmatprep.subr.mxu0 0.0
    %358 = vmatpush1.msra.mxu0 0.0
    %359 = vmatprep.subr.mxu0 0.0
    %360 = vmatpush1.msra.mxu0 0.0
    %361 = vmatprep.subr.mxu0 0.0
    %362 = vmatpush1.msra.mxu0 0.0
    %363 = vmatprep.subr.mxu0 0.0
    %364 = vmatpush1.msra.mxu0 0.0
    %365 = vmatprep.subr.mxu0 0.0
    %366 = vmatpush1.msra.mxu0 0.0
    %367 = vmatprep.subr.mxu0 0.0
    %368 = vmatpush1.msra.mxu0 0.0
    %369 = vmatprep.subr.mxu0 0.0
    %370 = vmatpush1.msra.mxu0 0.0
    %371 = vmatprep.subr.mxu0 0.0
    %372 = vmatpush1.msra.mxu0 0.0
    %373 = vmatprep.subr.mxu0 0.0
    %374 = vmatpush1.msra.mxu0 0.0
    %375 = vmatprep.subr.mxu0 0.0
    %376 = vmatpush1.msra.mxu0 0.0
    %377 = vmatprep.subr.mxu0 0.0
    %378 = vmatpush1.msra.mxu0 0.0
    %379 = vmatprep.subr.mxu0 0.0
    %380 = vmatpush1.msra.mxu0 0.0
    %381 = vmatprep.subr.mxu0 0.0
    %382 = vmatpush1.msra.mxu0 0.0
    %383 = vmatprep.subr.mxu0 0.0
    %384 = vmatpush1.msra.mxu0 0.0
    %385 = vmatprep.mubr.f32.mxu0 0.0
    %386 = vmatmul.mubr.f32.gmra.mrb[0].mxu0 %v310
    %v387 = vpop.f32.mrb[0].mxu0
    %v388 = vadd.f32 %v307, %v387
    %v389 = vpop.f32.mrb[0].mxu0
    %390 = vmatprep.mubr.f32.mxu0 0.0
    %391 = vmatmul.mubr.f32.gmra.mrb[0].mxu0 %v313
    %v392 = vpop.f32.mrb[0].mxu0
    %v393 = vadd.f32 %v307, %v392
    %v394 = vpop.f32.mrb[0].mxu0
    %395 = vmatprep.mubr.f32.mxu0 0.0
    %396 = vmatmul.mubr.f32.gmra.mrb[0].mxu0 %v316
    %v397 = vpop.f32.mrb[0].mxu0
    %v398 = vadd.f32 %v307, %v397
    %v399 = vpop.f32.mrb[0].mxu0
    %400 = vmatprep.mubr.f32.mxu0 0.0
    %401 = vmatmul.mubr.f32.gmra.mrb[0].mxu0 %v319
    %v402 = vpop.f32.mrb[0].mxu0
    %v403 = vadd.f32 %v307, %v402
    %v404 = vpop.f32.mrb[0].mxu0
    %405 = vdwg.mxu0
    %406 = vst.msk [vmem:[#allocation2] sm:$0xff] %vm85, %v388
    %407 = vst.msk [vmem:[#allocation2 + $0x8] sm:$0xff] %vm85, %v393
    %408 = vst.msk [vmem:[#allocation2 + $0x10] sm:$0xff] %vm85, %v398
    %409 = vst.msk [vmem:[#allocation2 + $0x18] sm:$0xff] %vm85, %v403
    // Predicated region
    $region34: #{encoder_forward.11} parent=1 // pred_check
      _
    $region35: #{encoder_forward.11} parent=1 // pred_check_branch
      %411 = sbr.rel (0) target = $region37
    $region36: #{encoder_forward.11} parent=1 // pred_region
      %s413 = ssub.s32 512, 512
      %414 = vsyncadd [#allocation3], %s413
      %s415 = sshll.u32 [#allocation2], 4
      %s416 = int_to_ptr.vmem [resolvable:$true] %s415
      %421 = dma.vmem_to_hbm [thread:$0]  %s416, 512, %s8, [#allocation3], 128, 128, 8
    $region37: #{encoder_forward.11} parent=1 // pred_fallthru
      _
    // Predicated region
    $region38: #{encoder_forward.11} parent=1 // pred_check
      _
    $region39: #{encoder_forward.11} parent=1 // pred_check_branch
      %423 = sbr.rel (0) target = $region41
    $region40: #{encoder_forward.11} parent=1 // pred_region
      %424 = dma.done [#allocation3], 512
    $region41: #{encoder_forward.11} parent=1 // pred_fallthru
      _
    %425 = vsyncpa [#allocation3], 1

</llo_original>
